<compile_context>
chip_gen: v6e
topology: v6e:2x2x1
jax: 0.10.0
libtpu: 0.0.40
codegen_flags: <defaults>
</compile_context>

<pallas_src>
import jax
import jax.numpy as jnp
from jax.experimental import pallas as pl
from jax.experimental.pallas import tpu as pltpu

EPS = 1e-5          # unit_projection epsilon
NEG_SLOPE = 0.01    # nn.LeakyReLU default negative_slope


def _causal_holo_qkv_kernel(
    x_ref,                       # (bb, S, D)
    w1_ref, b1_ref,              # (D, 12D), (1, 12D)   fused q|k|v first layer
    w2q_ref, b2q_ref,            # (4D, D), (1, D)
    w2k_ref, b2k_ref,            # (4D, D), (1, D)
    w2v_ref, b2v_ref,            # (4D, D), (1, D)
    dft_ref,                     # (D, 2D)  = [cos | -sin]   forward DFT table
    idft_ref,                    # (2D, D)  = [cos ; -sin]/D inverse DFT table
    tril_ref,                    # (bb*S, bb*S) block-diagonal causal mask
    out_ref,                     # (bb, S, D)
):
    bb, S, D = x_ref.shape
    M = bb * S
    F = 4 * D

    def mm(a, b):
        return jnp.dot(a, b, preferred_element_type=jnp.float32)

    # Merge (bb, S) into rows; minor dim unchanged -> layout-free when S % 8 == 0.
    x = x_ref[...].reshape(M, D)
    dft = dft_ref[...]
    idft = idft_ref[...]

    # ---------------- fused q/k/v MLP ----------------
    h = mm(x, w1_ref[...]) + b1_ref[...]             # (M, 12D): one fat matmul
    h = jnp.where(h > 0, h, NEG_SLOPE * h)           # LeakyReLU
    yq = mm(h[:, :F], w2q_ref[...]) + b2q_ref[...]
    yk = mm(h[:, F:2 * F], w2k_ref[...]) + b2k_ref[...]
    yv = mm(h[:, 2 * F:], w2v_ref[...]) + b2v_ref[...]
    y = jnp.concatenate([yq, yk, yv], axis=0)        # (3M, D): q,k,v stacked on M

    # ------------- one fused forward DFT for all three streams -------------
    spec = mm(y, dft)                                # (3M, 2D) = [re | im]
    ar = spec[:, :D]
    ai = spec[:, D:]

    # ------------- unit projection in the frequency domain -------------
    denom = jnp.sqrt(ar * ar + ai * ai) + EPS
    inv = pl.reciprocal(denom, approx=True)          # EUP slot
    inv = inv * (2.0 - denom * inv)                  # one Newton step -> ~f32 exact
    ur = ar * inv
    ui = ai * inv

    qr, kr, vr = ur[:M], ur[M:2 * M], ur[2 * M:]
    qi, ki, vi = ui[:M], ui[M:2 * M], ui[2 * M:]

    # ------------- bind(k, v) in the frequency domain -------------
    xkr = kr * vr - ki * vi
    xki = kr * vi + ki * vr
    # real(ifft(.)) via one fused matmul against [C ; -S]/D
    xk = mm(jnp.concatenate([xkr, xki], axis=1), idft)   # (M, D)

    # ------------- causal cumsum (block-diag lower-triangular matmul) -------------
    s = mm(tril_ref[...], xk)                        # (M, D)

    # ------------- fft(s) * conj(Qhat)  (== unbind(s, q)), then ifft -------------
    sspec = mm(s, dft)                               # (M, 2D)
    sr = sspec[:, :D]
    si = sspec[:, D:]
    o_r = sr * qr + si * qi
    o_i = si * qr - sr * qi
    out = mm(jnp.concatenate([o_r, o_i], axis=1), idft)  # (M, D)

    out_ref[...] = out.reshape(bb, S, D).astype(out_ref.dtype)


def _pick_batch_block(B, S):
    """Choose batches-per-grid-step.

    Fatten M = bb*S rows toward the 128-wide MXU, but keep >= 2 grid steps when
    the batch allows so megacore / dual-TC chips (v7x) can shard the parallel axis.
    """
    if S % 8 != 0:
        return 1           # keep the (bb,S,D)->(bb*S,D) merge layout-free
    limit = max(1, 128 // max(S, 1))
    divisors = [d for d in range(1, B + 1) if B % d == 0]
    cands = [d for d in divisors if d <= limit] or [1]
    bb = max(cands)
    if B // bb < 2:
        smaller = [d for d in cands if B // d >= 2]
        if smaller:
            bb = max(smaller)
    return bb


def causal_holographic_qkv(x, params, *, batch_block=None):
    """x: (B, S, D) float32; params: dict of weights (see init_params)."""
    B, S, D = x.shape
    bb = batch_block if batch_block is not None else _pick_batch_block(B, S)
    assert B % bb == 0

    wq1, bq1, wq2, bq2 = params["q"]
    wk1, bk1, wk2, bk2 = params["k"]
    wv1, bv1, wv2, bv2 = params["v"]

    # Fused first-layer weights/biases for q|k|v.
    w1 = jnp.concatenate([wq1, wk1, wv1], axis=1)                 # (D, 12D)
    b1 = jnp.concatenate([bq1, bk1, bv1]).reshape(1, -1)          # (1, 12D)

    # DFT tables: forward [C | -S] (D, 2D) and inverse [C ; -S]/D (2D, D).
    jk = jnp.arange(D, dtype=jnp.float32)
    ang = 2.0 * jnp.pi * jnp.outer(jk, jk) / D
    cosm = jnp.cos(ang)
    sinm = jnp.sin(ang)
    dft = jnp.concatenate([cosm, -sinm], axis=1)                  # (D, 2D)
    idft = jnp.concatenate([cosm, -sinm], axis=0) / D             # (2D, D)

    # Precomputed block-diagonal causal mask for bb batches (grid-invariant input).
    tril = jnp.tril(jnp.ones((S, S), jnp.float32))
    tril_bd = jnp.kron(jnp.eye(bb, dtype=jnp.float32), tril)      # (bb*S, bb*S)

    weight_args = [
        w1, b1,
        wq2, bq2.reshape(1, -1),
        wk2, bk2.reshape(1, -1),
        wv2, bv2.reshape(1, -1),
        dft, idft, tril_bd,
    ]

    x_spec = pl.BlockSpec((bb, S, D), lambda i: (i, 0, 0))
    out_spec = pl.BlockSpec((bb, S, D), lambda i: (i, 0, 0))
    # Grid-invariant operands: constant index_map -> fetched once across the grid.
    inv_spec = lambda a: pl.BlockSpec(a.shape, lambda i: (0, 0))
    in_specs = [x_spec] + [inv_spec(a) for a in weight_args]

    return pl.pallas_call(
        _causal_holo_qkv_kernel,
        out_shape=jax.ShapeDtypeStruct((B, S, D), jnp.float32),
        grid_spec=pltpu.PrefetchScalarGridSpec(
            num_scalar_prefetch=0,
            grid=(B // bb,),
            in_specs=in_specs,
            out_specs=out_spec,
        ),
        compiler_params=pltpu.CompilerParams(
            dimension_semantics=("parallel",),
        ),
    )(x, *weight_args)


def init_params(key, dims):
    """Deterministic param init mimicking nn.Linear default ranges.

    Stored as (in, out) layout so the kernel does x @ W + b."""
    ff = 4 * dims
    params = {}
    for name in ("q", "k", "v"):
        key, k1, k2, k3, k4 = jax.random.split(key, 5)
        bound1 = 1.0 / jnp.sqrt(dims)
        bound2 = 1.0 / jnp.sqrt(ff)
        w1 = jax.random.uniform(k1, (dims, ff), jnp.float32, -bound1, bound1)
        b1 = jax.random.uniform(k2, (ff,), jnp.float32, -bound1, bound1)
        w2 = jax.random.uniform(k3, (ff, dims), jnp.float32, -bound2, bound2)
        b2 = jax.random.uniform(k4, (dims,), jnp.float32, -bound2, bound2)
        params[name] = (w1, b1, w2, b2)
    return params


# ----------------------------- pure-JAX reference -----------------------------
def _ref_forward(x, params):
    def fft(a): return jnp.fft.fft(a, axis=-1)
    def ifft(a): return jnp.fft.ifft(a, axis=-1)
    def bind(a, b): return jnp.real(ifft(fft(a) * fft(b)))
    def inverse(a): return jnp.real(ifft(jnp.conj(fft(a))))
    def unbind(s, a): return bind(s, inverse(a))
    def unit_projection(a):
        ah = fft(a)
        return jnp.real(ifft(ah / (jnp.abs(ah) + EPS)))
    def mlp(a, p):
        w1, b1, w2, b2 = p
        h = a @ w1 + b1
        h = jnp.where(h > 0, h, NEG_SLOPE * h)
        return h @ w2 + b2

    q = unit_projection(mlp(x, params["q"]))
    k = unit_projection(mlp(x, params["k"]))
    v = unit_projection(mlp(x, params["v"]))
    x_k = bind(k, v)
    s = jnp.cumsum(x_k, axis=1)
    return unbind(s, q)


if __name__ == "__main__":
    B, S, D = 2, 8, 32

    key = jax.random.PRNGKey(0)
    key, xkey = jax.random.split(key)
    x = jax.random.normal(xkey, (B, S, D), dtype=jnp.float32)
    params = init_params(key, D)

    out = causal_holographic_qkv(x, params)
    out = jax.block_until_ready(out)

    ref = jax.block_until_ready(_ref_forward(x, params))
    assert out.shape == (B, S, D)
    assert jnp.all(jnp.isfinite(out))
    assert jnp.allclose(out, ref, atol=2e-2, rtol=2e-2)

    print("KERNEL_OK")
</pallas_src>

<mosaic_0001>
module attributes {stable_mosaic.version = 11 : i64} {
  func.func @_causal_holo_qkv_kernel(%arg0: i32, %arg1: memref<1x8x32xf32, #tpu.memory_space<vmem>>, %arg2: memref<32x384xf32, #tpu.memory_space<vmem>>, %arg3: memref<1x384xf32, #tpu.memory_space<vmem>>, %arg4: memref<128x32xf32, #tpu.memory_space<vmem>>, %arg5: memref<1x32xf32, #tpu.memory_space<vmem>>, %arg6: memref<128x32xf32, #tpu.memory_space<vmem>>, %arg7: memref<1x32xf32, #tpu.memory_space<vmem>>, %arg8: memref<128x32xf32, #tpu.memory_space<vmem>>, %arg9: memref<1x32xf32, #tpu.memory_space<vmem>>, %arg10: memref<32x64xf32, #tpu.memory_space<vmem>>, %arg11: memref<64x32xf32, #tpu.memory_space<vmem>>, %arg12: memref<8x8xf32, #tpu.memory_space<vmem>>, %arg13: memref<1x8x32xf32, #tpu.memory_space<vmem>>) attributes {dimension_semantics = [#tpu.dimension_semantics<parallel>], iteration_bounds = array<i64: 2>, scalar_prefetch = 0 : i64, scratch_operands = 0 : i64, tpu.core_type = #tpu.core_type<tc>, window_params = [{transform_indices = @transform_0, window_bounds = array<i64: 1, 8, 32>}, {pipeline_mode = #tpu.pipeline_mode<synchronous>, transform_indices = @transform_1, window_bounds = array<i64: 32, 384>}, {pipeline_mode = #tpu.pipeline_mode<synchronous>, transform_indices = @transform_2, window_bounds = array<i64: 1, 384>}, {pipeline_mode = #tpu.pipeline_mode<synchronous>, transform_indices = @transform_3, window_bounds = array<i64: 128, 32>}, {pipeline_mode = #tpu.pipeline_mode<synchronous>, transform_indices = @transform_4, window_bounds = array<i64: 1, 32>}, {pipeline_mode = #tpu.pipeline_mode<synchronous>, transform_indices = @transform_5, window_bounds = array<i64: 128, 32>}, {pipeline_mode = #tpu.pipeline_mode<synchronous>, transform_indices = @transform_6, window_bounds = array<i64: 1, 32>}, {pipeline_mode = #tpu.pipeline_mode<synchronous>, transform_indices = @transform_7, window_bounds = array<i64: 128, 32>}, {pipeline_mode = #tpu.pipeline_mode<synchronous>, transform_indices = @transform_8, window_bounds = array<i64: 1, 32>}, {pipeline_mode = #tpu.pipeline_mode<synchronous>, transform_indices = @transform_9, window_bounds = array<i64: 32, 64>}, {pipeline_mode = #tpu.pipeline_mode<synchronous>, transform_indices = @transform_10, window_bounds = array<i64: 64, 32>}, {pipeline_mode = #tpu.pipeline_mode<synchronous>, transform_indices = @transform_11, window_bounds = array<i64: 8, 8>}, {transform_indices = @transform_12, window_bounds = array<i64: 1, 8, 32>}]} {
    %c0 = arith.constant 0 : index
    %c0_0 = arith.constant 0 : index
    %c0_1 = arith.constant 0 : index
    %0 = vector.load %arg1[%c0, %c0_0, %c0_1] : memref<1x8x32xf32, #tpu.memory_space<vmem>>, vector<1x8x32xf32>
    %1 = vector.shape_cast %0 : vector<1x8x32xf32> to vector<8x32xf32>
    %c0_2 = arith.constant 0 : index
    %c0_3 = arith.constant 0 : index
    %2 = vector.load %arg10[%c0_2, %c0_3] : memref<32x64xf32, #tpu.memory_space<vmem>>, vector<32x64xf32>
    %c0_4 = arith.constant 0 : index
    %c0_5 = arith.constant 0 : index
    %3 = vector.load %arg11[%c0_4, %c0_5] : memref<64x32xf32, #tpu.memory_space<vmem>>, vector<64x32xf32>
    %c0_6 = arith.constant 0 : index
    %c0_7 = arith.constant 0 : index
    %4 = vector.load %arg2[%c0_6, %c0_7] : memref<32x384xf32, #tpu.memory_space<vmem>>, vector<32x384xf32>
    %cst = arith.constant dense<0.000000e+00> : vector<8x384xf32>
    %5 = tpu.matmul %1, %4, %cst {dimension_numbers = #tpu.dot_dimension_numbers<[1], [0], [0], [1], [0, 0, 1, 1], [], []>} : vector<8x32xf32>, vector<32x384xf32>, vector<8x384xf32> -> vector<8x384xf32>
    %c0_8 = arith.constant 0 : index
    %c0_9 = arith.constant 0 : index
    %6 = vector.load %arg3[%c0_8, %c0_9] : memref<1x384xf32, #tpu.memory_space<vmem>>, vector<1x384xf32>
    %7 = vector.broadcast %6 : vector<1x384xf32> to vector<8x384xf32>
    %8 = arith.addf %5, %7 : vector<8x384xf32>
    %cst_10 = arith.constant 0.000000e+00 : f32
    %9 = vector.broadcast %cst_10 : f32 to vector<8x384xf32>
    %10 = arith.cmpf ogt, %8, %9 : vector<8x384xf32>
    %cst_11 = arith.constant 0.00999999977 : f32
    %11 = vector.broadcast %cst_11 : f32 to vector<8x384xf32>
    %12 = arith.mulf %11, %8 : vector<8x384xf32>
    %13 = arith.select %10, %8, %12 : vector<8x384xi1>, vector<8x384xf32>
    %14 = vector.extract_strided_slice %13 {offsets = [0, 0], sizes = [8, 128], strides = [1, 1]} : vector<8x384xf32> to vector<8x128xf32>
    %c0_12 = arith.constant 0 : index
    %c0_13 = arith.constant 0 : index
    %15 = vector.load %arg4[%c0_12, %c0_13] : memref<128x32xf32, #tpu.memory_space<vmem>>, vector<128x32xf32>
    %cst_14 = arith.constant dense<0.000000e+00> : vector<8x32xf32>
    %16 = tpu.matmul %14, %15, %cst_14 {dimension_numbers = #tpu.dot_dimension_numbers<[1], [0], [0], [1], [0, 0, 1, 1], [], []>} : vector<8x128xf32>, vector<128x32xf32>, vector<8x32xf32> -> vector<8x32xf32>
    %c0_15 = arith.constant 0 : index
    %c0_16 = arith.constant 0 : index
    %17 = vector.load %arg5[%c0_15, %c0_16] : memref<1x32xf32, #tpu.memory_space<vmem>>, vector<1x32xf32>
    %18 = vector.broadcast %17 : vector<1x32xf32> to vector<8x32xf32>
    %19 = arith.addf %16, %18 : vector<8x32xf32>
    %20 = vector.extract_strided_slice %13 {offsets = [0, 128], sizes = [8, 128], strides = [1, 1]} : vector<8x384xf32> to vector<8x128xf32>
    %c0_17 = arith.constant 0 : index
    %c0_18 = arith.constant 0 : index
    %21 = vector.load %arg6[%c0_17, %c0_18] : memref<128x32xf32, #tpu.memory_space<vmem>>, vector<128x32xf32>
    %cst_19 = arith.constant dense<0.000000e+00> : vector<8x32xf32>
    %22 = tpu.matmul %20, %21, %cst_19 {dimension_numbers = #tpu.dot_dimension_numbers<[1], [0], [0], [1], [0, 0, 1, 1], [], []>} : vector<8x128xf32>, vector<128x32xf32>, vector<8x32xf32> -> vector<8x32xf32>
    %c0_20 = arith.constant 0 : index
    %c0_21 = arith.constant 0 : index
    %23 = vector.load %arg7[%c0_20, %c0_21] : memref<1x32xf32, #tpu.memory_space<vmem>>, vector<1x32xf32>
    %24 = vector.broadcast %23 : vector<1x32xf32> to vector<8x32xf32>
    %25 = arith.addf %22, %24 : vector<8x32xf32>
    %26 = vector.extract_strided_slice %13 {offsets = [0, 256], sizes = [8, 128], strides = [1, 1]} : vector<8x384xf32> to vector<8x128xf32>
    %c0_22 = arith.constant 0 : index
    %c0_23 = arith.constant 0 : index
    %27 = vector.load %arg8[%c0_22, %c0_23] : memref<128x32xf32, #tpu.memory_space<vmem>>, vector<128x32xf32>
    %cst_24 = arith.constant dense<0.000000e+00> : vector<8x32xf32>
    %28 = tpu.matmul %26, %27, %cst_24 {dimension_numbers = #tpu.dot_dimension_numbers<[1], [0], [0], [1], [0, 0, 1, 1], [], []>} : vector<8x128xf32>, vector<128x32xf32>, vector<8x32xf32> -> vector<8x32xf32>
    %c0_25 = arith.constant 0 : index
    %c0_26 = arith.constant 0 : index
    %29 = vector.load %arg9[%c0_25, %c0_26] : memref<1x32xf32, #tpu.memory_space<vmem>>, vector<1x32xf32>
    %30 = vector.broadcast %29 : vector<1x32xf32> to vector<8x32xf32>
    %31 = arith.addf %28, %30 : vector<8x32xf32>
    %32 = tpu.concatenate %19, %25, %31 in 0 : vector<8x32xf32>, vector<8x32xf32>, vector<8x32xf32> -> vector<24x32xf32>
    %cst_27 = arith.constant dense<0.000000e+00> : vector<24x64xf32>
    %33 = tpu.matmul %32, %2, %cst_27 {dimension_numbers = #tpu.dot_dimension_numbers<[1], [0], [0], [1], [0, 0, 1, 1], [], []>} : vector<24x32xf32>, vector<32x64xf32>, vector<24x64xf32> -> vector<24x64xf32>
    %34 = vector.extract_strided_slice %33 {offsets = [0, 0], sizes = [24, 32], strides = [1, 1]} : vector<24x64xf32> to vector<24x32xf32>
    %35 = vector.extract_strided_slice %33 {offsets = [0, 32], sizes = [24, 32], strides = [1, 1]} : vector<24x64xf32> to vector<24x32xf32>
    %36 = arith.mulf %34, %34 : vector<24x32xf32>
    %37 = arith.mulf %35, %35 : vector<24x32xf32>
    %38 = arith.addf %36, %37 : vector<24x32xf32>
    %39 = math.sqrt %38 : vector<24x32xf32>
    %cst_28 = arith.constant 9.99999974E-6 : f32
    %40 = vector.broadcast %cst_28 : f32 to vector<24x32xf32>
    %41 = arith.addf %39, %40 : vector<24x32xf32>
    %42 = tpu.reciprocal %41 {approx = true} : vector<24x32xf32> -> vector<24x32xf32>
    %43 = arith.mulf %41, %42 : vector<24x32xf32>
    %cst_29 = arith.constant 2.000000e+00 : f32
    %44 = vector.broadcast %cst_29 : f32 to vector<24x32xf32>
    %45 = arith.subf %44, %43 : vector<24x32xf32>
    %46 = arith.mulf %42, %45 : vector<24x32xf32>
    %47 = arith.mulf %34, %46 : vector<24x32xf32>
    %48 = arith.mulf %35, %46 : vector<24x32xf32>
    %49 = vector.extract_strided_slice %47 {offsets = [0, 0], sizes = [8, 32], strides = [1, 1]} : vector<24x32xf32> to vector<8x32xf32>
    %50 = vector.extract_strided_slice %47 {offsets = [8, 0], sizes = [8, 32], strides = [1, 1]} : vector<24x32xf32> to vector<8x32xf32>
    %51 = vector.extract_strided_slice %47 {offsets = [16, 0], sizes = [8, 32], strides = [1, 1]} : vector<24x32xf32> to vector<8x32xf32>
    %52 = vector.extract_strided_slice %48 {offsets = [0, 0], sizes = [8, 32], strides = [1, 1]} : vector<24x32xf32> to vector<8x32xf32>
    %53 = vector.extract_strided_slice %48 {offsets = [8, 0], sizes = [8, 32], strides = [1, 1]} : vector<24x32xf32> to vector<8x32xf32>
    %54 = vector.extract_strided_slice %48 {offsets = [16, 0], sizes = [8, 32], strides = [1, 1]} : vector<24x32xf32> to vector<8x32xf32>
    %55 = arith.mulf %50, %51 : vector<8x32xf32>
    %56 = arith.mulf %53, %54 : vector<8x32xf32>
    %57 = arith.subf %55, %56 : vector<8x32xf32>
    %58 = arith.mulf %50, %54 : vector<8x32xf32>
    %59 = arith.mulf %53, %51 : vector<8x32xf32>
    %60 = arith.addf %58, %59 : vector<8x32xf32>
    %61 = tpu.concatenate %57, %60 in 1 : vector<8x32xf32>, vector<8x32xf32> -> vector<8x64xf32>
    %cst_30 = arith.constant dense<0.000000e+00> : vector<8x32xf32>
    %62 = tpu.matmul %61, %3, %cst_30 {dimension_numbers = #tpu.dot_dimension_numbers<[1], [0], [0], [1], [0, 0, 1, 1], [], []>} : vector<8x64xf32>, vector<64x32xf32>, vector<8x32xf32> -> vector<8x32xf32>
    %c0_31 = arith.constant 0 : index
    %c0_32 = arith.constant 0 : index
    %63 = vector.load %arg12[%c0_31, %c0_32] : memref<8x8xf32, #tpu.memory_space<vmem>>, vector<8x8xf32>
    %cst_33 = arith.constant dense<0.000000e+00> : vector<8x32xf32>
    %64 = tpu.matmul %63, %62, %cst_33 {dimension_numbers = #tpu.dot_dimension_numbers<[1], [0], [0], [1], [0, 0, 1, 1], [], []>} : vector<8x8xf32>, vector<8x32xf32>, vector<8x32xf32> -> vector<8x32xf32>
    %cst_34 = arith.constant dense<0.000000e+00> : vector<8x64xf32>
    %65 = tpu.matmul %64, %2, %cst_34 {dimension_numbers = #tpu.dot_dimension_numbers<[1], [0], [0], [1], [0, 0, 1, 1], [], []>} : vector<8x32xf32>, vector<32x64xf32>, vector<8x64xf32> -> vector<8x64xf32>
    %66 = vector.extract_strided_slice %65 {offsets = [0, 0], sizes = [8, 32], strides = [1, 1]} : vector<8x64xf32> to vector<8x32xf32>
    %67 = vector.extract_strided_slice %65 {offsets = [0, 32], sizes = [8, 32], strides = [1, 1]} : vector<8x64xf32> to vector<8x32xf32>
    %68 = arith.mulf %66, %49 : vector<8x32xf32>
    %69 = arith.mulf %67, %52 : vector<8x32xf32>
    %70 = arith.addf %68, %69 : vector<8x32xf32>
    %71 = arith.mulf %67, %49 : vector<8x32xf32>
    %72 = arith.mulf %66, %52 : vector<8x32xf32>
    %73 = arith.subf %71, %72 : vector<8x32xf32>
    %74 = tpu.concatenate %70, %73 in 1 : vector<8x32xf32>, vector<8x32xf32> -> vector<8x64xf32>
    %cst_35 = arith.constant dense<0.000000e+00> : vector<8x32xf32>
    %75 = tpu.matmul %74, %3, %cst_35 {dimension_numbers = #tpu.dot_dimension_numbers<[1], [0], [0], [1], [0, 0, 1, 1], [], []>} : vector<8x64xf32>, vector<64x32xf32>, vector<8x32xf32> -> vector<8x32xf32>
    %76 = vector.shape_cast %75 : vector<8x32xf32> to vector<1x8x32xf32>
    %c0_36 = arith.constant 0 : index
    %c0_37 = arith.constant 0 : index
    %c0_38 = arith.constant 0 : index
    %77 = vector.load %arg13[%c0_36, %c0_37, %c0_38] : memref<1x8x32xf32, #tpu.memory_space<vmem>>, vector<1x8x32xf32>
    tpu.vector_store %arg13[%c0_36, %c0_37, %c0_38], %76 {strides = array<i32>} : memref<1x8x32xf32, #tpu.memory_space<vmem>>, vector<1x8x32xf32>,
    return
  }
  func.func @transform_0(%arg0: i32) -> (i32, i32, i32) {
    %c0_i32 = arith.constant 0 : i32
    %c0_i32_0 = arith.constant 0 : i32
    %c0_i32_1 = arith.constant 0 : i32
    return %arg0, %c0_i32, %c0_i32_0 : i32, i32, i32
  }
  func.func @transform_1(%arg0: i32) -> (i32, i32) {
    %c0_i32 = arith.constant 0 : i32
    %c0_i32_0 = arith.constant 0 : i32
    %c0_i32_1 = arith.constant 0 : i32
    return %c0_i32, %c0_i32_0 : i32, i32
  }
  func.func @transform_2(%arg0: i32) -> (i32, i32) {
    %c0_i32 = arith.constant 0 : i32
    %c0_i32_0 = arith.constant 0 : i32
    %c0_i32_1 = arith.constant 0 : i32
    return %c0_i32, %c0_i32_0 : i32, i32
  }
  func.func @transform_3(%arg0: i32) -> (i32, i32) {
    %c0_i32 = arith.constant 0 : i32
    %c0_i32_0 = arith.constant 0 : i32
    %c0_i32_1 = arith.constant 0 : i32
    return %c0_i32, %c0_i32_0 : i32, i32
  }
  func.func @transform_4(%arg0: i32) -> (i32, i32) {
    %c0_i32 = arith.constant 0 : i32
    %c0_i32_0 = arith.constant 0 : i32
    %c0_i32_1 = arith.constant 0 : i32
    return %c0_i32, %c0_i32_0 : i32, i32
  }
  func.func @transform_5(%arg0: i32) -> (i32, i32) {
    %c0_i32 = arith.constant 0 : i32
    %c0_i32_0 = arith.constant 0 : i32
    %c0_i32_1 = arith.constant 0 : i32
    return %c0_i32, %c0_i32_0 : i32, i32
  }
  func.func @transform_6(%arg0: i32) -> (i32, i32) {
    %c0_i32 = arith.constant 0 : i32
    %c0_i32_0 = arith.constant 0 : i32
    %c0_i32_1 = arith.constant 0 : i32
    return %c0_i32, %c0_i32_0 : i32, i32
  }
  func.func @transform_7(%arg0: i32) -> (i32, i32) {
    %c0_i32 = arith.constant 0 : i32
    %c0_i32_0 = arith.constant 0 : i32
    %c0_i32_1 = arith.constant 0 : i32
    return %c0_i32, %c0_i32_0 : i32, i32
  }
  func.func @transform_8(%arg0: i32) -> (i32, i32) {
    %c0_i32 = arith.constant 0 : i32
    %c0_i32_0 = arith.constant 0 : i32
    %c0_i32_1 = arith.constant 0 : i32
    return %c0_i32, %c0_i32_0 : i32, i32
  }
  func.func @transform_9(%arg0: i32) -> (i32, i32) {
    %c0_i32 = arith.constant 0 : i32
    %c0_i32_0 = arith.constant 0 : i32
    %c0_i32_1 = arith.constant 0 : i32
    return %c0_i32, %c0_i32_0 : i32, i32
  }
  func.func @transform_10(%arg0: i32) -> (i32, i32) {
    %c0_i32 = arith.constant 0 : i32
    %c0_i32_0 = arith.constant 0 : i32
    %c0_i32_1 = arith.constant 0 : i32
    return %c0_i32, %c0_i32_0 : i32, i32
  }
  func.func @transform_11(%arg0: i32) -> (i32, i32) {
    %c0_i32 = arith.constant 0 : i32
    %c0_i32_0 = arith.constant 0 : i32
    %c0_i32_1 = arith.constant 0 : i32
    return %c0_i32, %c0_i32_0 : i32, i32
  }
  func.func @transform_12(%arg0: i32) -> (i32, i32, i32) {
    %c0_i32 = arith.constant 0 : i32
    %c0_i32_0 = arith.constant 0 : i32
    %c0_i32_1 = arith.constant 0 : i32
    return %arg0, %c0_i32, %c0_i32_0 : i32, i32, i32
  }
}

</mosaic_0001>

<llo_original>
// kernel: tpu_custom_call.1
$region0: #{tpu_custom_call.1}
  #allocation0 [shape = 'u32[]', space=smem, size = 0x4, offset = 0x4, fixed_abs, tag = 'smem constant byte address 0x4 - core index']
  #allocation1 [shape = 'u32[144,128]{1,0:T(1,128)}', space=vmem, size = 0x12000, scoped, tag = 'internal scratch']
  %s0 = inlined_call_operand.vmem [shape: f32[2,8,32], index: 0, kind: input, shape index: {}]
  %s1 = inlined_call_operand.vmem [shape: f32[32,384], index: 1, kind: input, shape index: {}]
  %s2 = inlined_call_operand.vmem [shape: f32[1,384], index: 2, kind: input, shape index: {}]
  %s3 = inlined_call_operand.vmem [shape: f32[128,32], index: 3, kind: input, shape index: {}]
  %s4 = inlined_call_operand.vmem [shape: f32[1,32], index: 4, kind: input, shape index: {}]
  %s5 = inlined_call_operand.vmem [shape: f32[128,32], index: 5, kind: input, shape index: {}]
  %s6 = inlined_call_operand.vmem [shape: f32[1,32], index: 6, kind: input, shape index: {}]
  %s7 = inlined_call_operand.vmem [shape: f32[128,32], index: 7, kind: input, shape index: {}]
  %s8 = inlined_call_operand.vmem [shape: f32[1,32], index: 8, kind: input, shape index: {}]
  %s9 = inlined_call_operand.vmem [shape: f32[32,64], index: 9, kind: input, shape index: {}]
  %s10 = inlined_call_operand.vmem [shape: f32[64,32], index: 10, kind: input, shape index: {}]
  %s11 = inlined_call_operand.vmem [shape: f32[8,8], index: 11, kind: input, shape index: {}]
  %s12 = inlined_call_operand.hbm [shape: f32[2,8,32], index: 12, kind: output, shape index: {}]
  %s13 = sld [smem:[#allocation0]]
  $region81: #{tpu_custom_call.1} parent=0
    _
  %s15 = ssub.s32 1, %s13
  %s16 = scalar_select 0, %s15, %s13
  $region1: #{tpu_custom_call.1} parent=0
    #allocation2 [shape = 'u8[8192]{0}', space=vmem, size = 0x2000, scoped, tag = 'output window, operand 0']
    #allocation3 [shape = 's32[2]{0}', space=sflag, size = 0x8, scoped, tag = 'scoped memory for tpu_custom_call.1']
    %17 = vsyncpa [#allocation3], 0
    %s18 = scalar_lea.sflag [#allocation3], 1
    %19 = vsyncpa %s18, 0
    loop: start=0, step=1, limit=4
    $region2: #{tpu_custom_call.1} parent=1 // loop_pre_header
      _
    $region3: #{tpu_custom_call.1} parent=1 // loop_header
      %s21 = sphi 0, %s25
      %p22 = scmp.ge.s32.totalorder %s21, 4
      %s31 = sphi 0, %s33
      %s34 = sphi 0, %s31
      %s35 = sphi 0, %s34
      %s51 = sphi 0, %s35
      %s55 = sphi 0, %s55
      %s57 = sphi 0, %s55
      %s58 = sphi 0, %s57
      %s72 = sphi 0, %s58
      %s76 = sphi 0, %s76
      %s78 = sphi 0, %s76
      %s79 = sphi 0, %s78
      %s93 = sphi 0, %s79
      %s97 = sphi 0, %s97
      %s99 = sphi 0, %s97
      %s100 = sphi 0, %s99
      %s114 = sphi 0, %s100
      %s118 = sphi 0, %s118
      %s120 = sphi 0, %s118
      %s121 = sphi 0, %s120
      %s135 = sphi 0, %s121
      %s139 = sphi 0, %s139
      %s141 = sphi 0, %s139
      %s142 = sphi 0, %s141
      %s156 = sphi 0, %s142
      %s160 = sphi 0, %s160
      %s162 = sphi 0, %s160
      %s163 = sphi 0, %s162
      %s177 = sphi 0, %s163
      %s181 = sphi 0, %s181
      %s183 = sphi 0, %s181
      %s184 = sphi 0, %s183
      %s198 = sphi 0, %s184
      %s202 = sphi 0, %s202
      %s204 = sphi 0, %s202
      %s205 = sphi 0, %s204
      %s219 = sphi 0, %s205
      %s223 = sphi 0, %s223
      %s225 = sphi 0, %s223
      %s226 = sphi 0, %s225
      %s240 = sphi 0, %s226
      %s244 = sphi 0, %s244
      %s246 = sphi 0, %s244
      %s247 = sphi 0, %s246
      %s261 = sphi 0, %s247
      %s265 = sphi 0, %s265
      %s267 = sphi 0, %s265
      %s268 = sphi 0, %s267
      %s282 = sphi 0, %s268
      %s288 = sphi 0, %s290
      %s291 = sphi 0, %s288
      %s292 = sphi 0, %s291
      %s308 = sphi 0, %s292
    $region4: #{tpu_custom_call.1} parent=1 // loop_header_branch
      %24 = sbr.rel (%p22) target = $region8
    $region5: #{tpu_custom_call.1} parent=1 // loop_body
      %s26 = ssub.s32 %s21, 1
      %s27 = ssub.s32 %s21, 2
      %s28 = sadd.s32 %s21, 1
      %s29 = ssub.s32 %s21, %s28
      %p30 = scmp.eq.s32.totalorder %s29, 0
      %s32 = sadd.s32 %s31, 1
      %s33 = scalar_select %p30, %s31, %s32
      %p36 = pneg %p30
      %p37 = scmp.eq.s32.totalorder %s21, 1
      %p38 = por %p36, %p37
      %p39 = scmp.ne.s32.totalorder %s31, %s34
      %p40 = scmp.eq.s32.totalorder %s21, 0
      %p41 = por %p39, %p40
      %p42 = scmp.ne.s32.totalorder %s31, %s34
      %p43 = scmp.eq.s32.totalorder %s26, 1
      %p44 = por %p42, %p43
      %p45 = scmp.ne.s32.totalorder %s34, %s35
      %p46 = scmp.eq.s32.totalorder %s26, 0
      %p47 = por %p45, %p46
      %p48 = scmp.ne.s32.totalorder %s34, %s35
      %p49 = scmp.eq.s32.totalorder %s27, 1
      %p50 = por %p48, %p49
      %p52 = scmp.ne.s32.totalorder %s35, %s51
      %p53 = scmp.eq.s32.totalorder %s27, 0
      %p54 = por %p52, %p53
      %s56 = sadd.s32 %s55, 1
      %p59 = scmp.eq.s32.totalorder %s21, 1
      %p60 = scmp.ne.s32.totalorder %s55, %s57
      %p61 = scmp.eq.s32.totalorder %s21, 0
      %p62 = por %p60, %p61
      %p63 = scmp.ne.s32.totalorder %s55, %s57
      %p64 = scmp.eq.s32.totalorder %s26, 1
      %p65 = por %p63, %p64
      %p66 = scmp.ne.s32.totalorder %s57, %s58
      %p67 = scmp.eq.s32.totalorder %s26, 0
      %p68 = por %p66, %p67
      %p69 = scmp.ne.s32.totalorder %s57, %s58
      %p70 = scmp.eq.s32.totalorder %s27, 1
      %p71 = por %p69, %p70
      %p73 = scmp.ne.s32.totalorder %s58, %s72
      %p74 = scmp.eq.s32.totalorder %s27, 0
      %p75 = por %p73, %p74
      %s77 = sadd.s32 %s76, 1
      %p80 = scmp.eq.s32.totalorder %s21, 1
      %p81 = scmp.ne.s32.totalorder %s76, %s78
      %p82 = scmp.eq.s32.totalorder %s21, 0
      %p83 = por %p81, %p82
      %p84 = scmp.ne.s32.totalorder %s76, %s78
      %p85 = scmp.eq.s32.totalorder %s26, 1
      %p86 = por %p84, %p85
      %p87 = scmp.ne.s32.totalorder %s78, %s79
      %p88 = scmp.eq.s32.totalorder %s26, 0
      %p89 = por %p87, %p88
      %p90 = scmp.ne.s32.totalorder %s78, %s79
      %p91 = scmp.eq.s32.totalorder %s27, 1
      %p92 = por %p90, %p91
      %p94 = scmp.ne.s32.totalorder %s79, %s93
      %p95 = scmp.eq.s32.totalorder %s27, 0
      %p96 = por %p94, %p95
      %s98 = sadd.s32 %s97, 1
      %p101 = scmp.eq.s32.totalorder %s21, 1
      %p102 = scmp.ne.s32.totalorder %s97, %s99
      %p103 = scmp.eq.s32.totalorder %s21, 0
      %p104 = por %p102, %p103
      %p105 = scmp.ne.s32.totalorder %s97, %s99
      %p106 = scmp.eq.s32.totalorder %s26, 1
      %p107 = por %p105, %p106
      %p108 = scmp.ne.s32.totalorder %s99, %s100
      %p109 = scmp.eq.s32.totalorder %s26, 0
      %p110 = por %p108, %p109
      %p111 = scmp.ne.s32.totalorder %s99, %s100
      %p112 = scmp.eq.s32.totalorder %s27, 1
      %p113 = por %p111, %p112
      %p115 = scmp.ne.s32.totalorder %s100, %s114
      %p116 = scmp.eq.s32.totalorder %s27, 0
      %p117 = por %p115, %p116
      %s119 = sadd.s32 %s118, 1
      %p122 = scmp.eq.s32.totalorder %s21, 1
      %p123 = scmp.ne.s32.totalorder %s118, %s120
      %p124 = scmp.eq.s32.totalorder %s21, 0
      %p125 = por %p123, %p124
      %p126 = scmp.ne.s32.totalorder %s118, %s120
      %p127 = scmp.eq.s32.totalorder %s26, 1
      %p128 = por %p126, %p127
      %p129 = scmp.ne.s32.totalorder %s120, %s121
      %p130 = scmp.eq.s32.totalorder %s26, 0
      %p131 = por %p129, %p130
      %p132 = scmp.ne.s32.totalorder %s120, %s121
      %p133 = scmp.eq.s32.totalorder %s27, 1
      %p134 = por %p132, %p133
      %p136 = scmp.ne.s32.totalorder %s121, %s135
      %p137 = scmp.eq.s32.totalorder %s27, 0
      %p138 = por %p136, %p137
      %s140 = sadd.s32 %s139, 1
      %p143 = scmp.eq.s32.totalorder %s21, 1
      %p144 = scmp.ne.s32.totalorder %s139, %s141
      %p145 = scmp.eq.s32.totalorder %s21, 0
      %p146 = por %p144, %p145
      %p147 = scmp.ne.s32.totalorder %s139, %s141
      %p148 = scmp.eq.s32.totalorder %s26, 1
      %p149 = por %p147, %p148
      %p150 = scmp.ne.s32.totalorder %s141, %s142
      %p151 = scmp.eq.s32.totalorder %s26, 0
      %p152 = por %p150, %p151
      %p153 = scmp.ne.s32.totalorder %s141, %s142
      %p154 = scmp.eq.s32.totalorder %s27, 1
      %p155 = por %p153, %p154
      %p157 = scmp.ne.s32.totalorder %s142, %s156
      %p158 = scmp.eq.s32.totalorder %s27, 0
      %p159 = por %p157, %p158
      %s161 = sadd.s32 %s160, 1
      %p164 = scmp.eq.s32.totalorder %s21, 1
      %p165 = scmp.ne.s32.totalorder %s160, %s162
      %p166 = scmp.eq.s32.totalorder %s21, 0
      %p167 = por %p165, %p166
      %p168 = scmp.ne.s32.totalorder %s160, %s162
      %p169 = scmp.eq.s32.totalorder %s26, 1
      %p170 = por %p168, %p169
      %p171 = scmp.ne.s32.totalorder %s162, %s163
      %p172 = scmp.eq.s32.totalorder %s26, 0
      %p173 = por %p171, %p172
      %p174 = scmp.ne.s32.totalorder %s162, %s163
      %p175 = scmp.eq.s32.totalorder %s27, 1
      %p176 = por %p174, %p175
      %p178 = scmp.ne.s32.totalorder %s163, %s177
      %p179 = scmp.eq.s32.totalorder %s27, 0
      %p180 = por %p178, %p179
      %s182 = sadd.s32 %s181, 1
      %p185 = scmp.eq.s32.totalorder %s21, 1
      %p186 = scmp.ne.s32.totalorder %s181, %s183
      %p187 = scmp.eq.s32.totalorder %s21, 0
      %p188 = por %p186, %p187
      %p189 = scmp.ne.s32.totalorder %s181, %s183
      %p190 = scmp.eq.s32.totalorder %s26, 1
      %p191 = por %p189, %p190
      %p192 = scmp.ne.s32.totalorder %s183, %s184
      %p193 = scmp.eq.s32.totalorder %s26, 0
      %p194 = por %p192, %p193
      %p195 = scmp.ne.s32.totalorder %s183, %s184
      %p196 = scmp.eq.s32.totalorder %s27, 1
      %p197 = por %p195, %p196
      %p199 = scmp.ne.s32.totalorder %s184, %s198
      %p200 = scmp.eq.s32.totalorder %s27, 0
      %p201 = por %p199, %p200
      %s203 = sadd.s32 %s202, 1
      %p206 = scmp.eq.s32.totalorder %s21, 1
      %p207 = scmp.ne.s32.totalorder %s202, %s204
      %p208 = scmp.eq.s32.totalorder %s21, 0
      %p209 = por %p207, %p208
      %p210 = scmp.ne.s32.totalorder %s202, %s204
      %p211 = scmp.eq.s32.totalorder %s26, 1
      %p212 = por %p210, %p211
      %p213 = scmp.ne.s32.totalorder %s204, %s205
      %p214 = scmp.eq.s32.totalorder %s26, 0
      %p215 = por %p213, %p214
      %p216 = scmp.ne.s32.totalorder %s204, %s205
      %p217 = scmp.eq.s32.totalorder %s27, 1
      %p218 = por %p216, %p217
      %p220 = scmp.ne.s32.totalorder %s205, %s219
      %p221 = scmp.eq.s32.totalorder %s27, 0
      %p222 = por %p220, %p221
      %s224 = sadd.s32 %s223, 1
      %p227 = scmp.eq.s32.totalorder %s21, 1
      %p228 = scmp.ne.s32.totalorder %s223, %s225
      %p229 = scmp.eq.s32.totalorder %s21, 0
      %p230 = por %p228, %p229
      %p231 = scmp.ne.s32.totalorder %s223, %s225
      %p232 = scmp.eq.s32.totalorder %s26, 1
      %p233 = por %p231, %p232
      %p234 = scmp.ne.s32.totalorder %s225, %s226
      %p235 = scmp.eq.s32.totalorder %s26, 0
      %p236 = por %p234, %p235
      %p237 = scmp.ne.s32.totalorder %s225, %s226
      %p238 = scmp.eq.s32.totalorder %s27, 1
      %p239 = por %p237, %p238
      %p241 = scmp.ne.s32.totalorder %s226, %s240
      %p242 = scmp.eq.s32.totalorder %s27, 0
      %p243 = por %p241, %p242
      %s245 = sadd.s32 %s244, 1
      %p248 = scmp.eq.s32.totalorder %s21, 1
      %p249 = scmp.ne.s32.totalorder %s244, %s246
      %p250 = scmp.eq.s32.totalorder %s21, 0
      %p251 = por %p249, %p250
      %p252 = scmp.ne.s32.totalorder %s244, %s246
      %p253 = scmp.eq.s32.totalorder %s26, 1
      %p254 = por %p252, %p253
      %p255 = scmp.ne.s32.totalorder %s246, %s247
      %p256 = scmp.eq.s32.totalorder %s26, 0
      %p257 = por %p255, %p256
      %p258 = scmp.ne.s32.totalorder %s246, %s247
      %p259 = scmp.eq.s32.totalorder %s27, 1
      %p260 = por %p258, %p259
      %p262 = scmp.ne.s32.totalorder %s247, %s261
      %p263 = scmp.eq.s32.totalorder %s27, 0
      %p264 = por %p262, %p263
      %s266 = sadd.s32 %s265, 1
      %p269 = scmp.eq.s32.totalorder %s21, 1
      %p270 = scmp.ne.s32.totalorder %s265, %s267
      %p271 = scmp.eq.s32.totalorder %s21, 0
      %p272 = por %p270, %p271
      %p273 = scmp.ne.s32.totalorder %s265, %s267
      %p274 = scmp.eq.s32.totalorder %s26, 1
      %p275 = por %p273, %p274
      %p276 = scmp.ne.s32.totalorder %s267, %s268
      %p277 = scmp.eq.s32.totalorder %s26, 0
      %p278 = por %p276, %p277
      %p279 = scmp.ne.s32.totalorder %s267, %s268
      %p280 = scmp.eq.s32.totalorder %s27, 1
      %p281 = por %p279, %p280
      %p283 = scmp.ne.s32.totalorder %s268, %s282
      %p284 = scmp.eq.s32.totalorder %s27, 0
      %p285 = por %p283, %p284
      %s286 = ssub.s32 %s21, %s28
      %p287 = scmp.eq.s32.totalorder %s286, 0
      %s289 = sadd.s32 %s288, 1
      %s290 = scalar_select %p287, %s288, %s289
      %p293 = pneg %p287
      %p294 = scmp.eq.s32.totalorder %s21, 1
      %p295 = por %p293, %p294
      %p296 = scmp.ne.s32.totalorder %s288, %s291
      %p297 = scmp.eq.s32.totalorder %s21, 0
      %p298 = por %p296, %p297
      %p299 = scmp.ne.s32.totalorder %s288, %s291
      %p300 = scmp.eq.s32.totalorder %s26, 1
      %p301 = por %p299, %p300
      %p302 = scmp.ne.s32.totalorder %s291, %s292
      %p303 = scmp.eq.s32.totalorder %s26, 0
      %p304 = por %p302, %p303
      %p305 = scmp.ne.s32.totalorder %s291, %s292
      %p306 = scmp.eq.s32.totalorder %s27, 1
      %p307 = por %p305, %p306
      %p309 = scmp.ne.s32.totalorder %s292, %s308
      %p310 = scmp.eq.s32.totalorder %s27, 0
      %p311 = por %p309, %p310
      %p312 = scmp.le.s32.totalorder 1, %s21
      %p313 = scmp.lt.s32.totalorder %s21, 3
      %p314 = pnand %p312, %p313
      %p315 = pneg %p314
      // Predicated region
      $region9: #{tpu_custom_call.1} parent=5 // pred_check
        _
      $region10: #{tpu_custom_call.1} parent=5 // pred_check_branch
        %317 = sbr.rel (%p314) target = $region12
      $region11: #{tpu_custom_call.1} parent=5 // pred_region
        %s318 = ssub.s32 %s21, 1
        // Predicated region
        $region13: #{tpu_custom_call.1} parent=11 // pred_check
          %p319 = pneg %p68
        $region14: #{tpu_custom_call.1} parent=11 // pred_check_branch
          %321 = sbr.rel (%p319) target = $region16
        $region15: #{tpu_custom_call.1} parent=11 // pred_region
          _
        $region16: #{tpu_custom_call.1} parent=11 // pred_fallthru
          _
        // Predicated region
        $region17: #{tpu_custom_call.1} parent=11 // pred_check
          %p322 = pneg %p89
        $region18: #{tpu_custom_call.1} parent=11 // pred_check_branch
          %324 = sbr.rel (%p322) target = $region20
        $region19: #{tpu_custom_call.1} parent=11 // pred_region
          _
        $region20: #{tpu_custom_call.1} parent=11 // pred_fallthru
          _
        // Predicated region
        $region21: #{tpu_custom_call.1} parent=11 // pred_check
          %p325 = pneg %p110
        $region22: #{tpu_custom_call.1} parent=11 // pred_check_branch
          %327 = sbr.rel (%p325) target = $region24
        $region23: #{tpu_custom_call.1} parent=11 // pred_region
          _
        $region24: #{tpu_custom_call.1} parent=11 // pred_fallthru
          _
        // Predicated region
        $region25: #{tpu_custom_call.1} parent=11 // pred_check
          %p328 = pneg %p131
        $region26: #{tpu_custom_call.1} parent=11 // pred_check_branch
          %330 = sbr.rel (%p328) target = $region28
        $region27: #{tpu_custom_call.1} parent=11 // pred_region
          _
        $region28: #{tpu_custom_call.1} parent=11 // pred_fallthru
          _
        // Predicated region
        $region29: #{tpu_custom_call.1} parent=11 // pred_check
          %p331 = pneg %p152
        $region30: #{tpu_custom_call.1} parent=11 // pred_check_branch
          %333 = sbr.rel (%p331) target = $region32
        $region31: #{tpu_custom_call.1} parent=11 // pred_region
          _
        $region32: #{tpu_custom_call.1} parent=11 // pred_fallthru
          _
        // Predicated region
        $region33: #{tpu_custom_call.1} parent=11 // pred_check
          %p334 = pneg %p173
        $region34: #{tpu_custom_call.1} parent=11 // pred_check_branch
          %336 = sbr.rel (%p334) target = $region36
        $region35: #{tpu_custom_call.1} parent=11 // pred_region
          _
        $region36: #{tpu_custom_call.1} parent=11 // pred_fallthru
          _
        // Predicated region
        $region37: #{tpu_custom_call.1} parent=11 // pred_check
          %p337 = pneg %p194
        $region38: #{tpu_custom_call.1} parent=11 // pred_check_branch
          %339 = sbr.rel (%p337) target = $region40
        $region39: #{tpu_custom_call.1} parent=11 // pred_region
          _
        $region40: #{tpu_custom_call.1} parent=11 // pred_fallthru
          _
        // Predicated region
        $region41: #{tpu_custom_call.1} parent=11 // pred_check
          %p340 = pneg %p215
        $region42: #{tpu_custom_call.1} parent=11 // pred_check_branch
          %342 = sbr.rel (%p340) target = $region44
        $region43: #{tpu_custom_call.1} parent=11 // pred_region
          _
        $region44: #{tpu_custom_call.1} parent=11 // pred_fallthru
          _
        // Predicated region
        $region45: #{tpu_custom_call.1} parent=11 // pred_check
          %p343 = pneg %p236
        $region46: #{tpu_custom_call.1} parent=11 // pred_check_branch
          %345 = sbr.rel (%p343) target = $region48
        $region47: #{tpu_custom_call.1} parent=11 // pred_region
          _
        $region48: #{tpu_custom_call.1} parent=11 // pred_fallthru
          _
        // Predicated region
        $region49: #{tpu_custom_call.1} parent=11 // pred_check
          %p346 = pneg %p257
        $region50: #{tpu_custom_call.1} parent=11 // pred_check_branch
          %348 = sbr.rel (%p346) target = $region52
        $region51: #{tpu_custom_call.1} parent=11 // pred_region
          _
        $region52: #{tpu_custom_call.1} parent=11 // pred_fallthru
          _
        // Predicated region
        $region53: #{tpu_custom_call.1} parent=11 // pred_check
          %p349 = pneg %p278
        $region54: #{tpu_custom_call.1} parent=11 // pred_check_branch
          %351 = sbr.rel (%p349) target = $region56
        $region55: #{tpu_custom_call.1} parent=11 // pred_region
          _
        $region56: #{tpu_custom_call.1} parent=11 // pred_fallthru
          _
      $region12: #{tpu_custom_call.1} parent=5 // pred_fallthru
        _
      %p352 = scmp.lt.s32.totalorder %s21, 2
      // Predicated region
      $region57: #{tpu_custom_call.1} parent=5 // pred_check
        %p353 = pneg %p352
      $region58: #{tpu_custom_call.1} parent=5 // pred_check_branch
        %355 = sbr.rel (%p353) target = $region60
      $region59: #{tpu_custom_call.1} parent=5 // pred_region
        // Predicated region
        $region61: #{tpu_custom_call.1} parent=59 // pred_check
          %p356 = pneg %p41
        $region62: #{tpu_custom_call.1} parent=59 // pred_check_branch
          %358 = sbr.rel (%p356) target = $region64
        $region63: #{tpu_custom_call.1} parent=59 // pred_region
          %p359 = scmp.lt.s32.totalorder %s21, 1
          %s360 = scalar_select %p359, %s21, 1
          %s361 = smul.addr %s360, 8
          %s362 = scalar_lea.vmem %s0, %s361
        $region64: #{tpu_custom_call.1} parent=59 // pred_fallthru
          _
      $region60: #{tpu_custom_call.1} parent=5 // pred_fallthru
        _
      %p363 = scmp.le.s32.totalorder 1, %s21
      %p364 = scmp.lt.s32.totalorder %s21, 3
      %p365 = pnand %p363, %p364
      %p366 = pneg %p365
      // Predicated region
      $region65: #{tpu_custom_call.1} parent=5 // pred_check
        _
      $region66: #{tpu_custom_call.1} parent=5 // pred_check_branch
        %368 = sbr.rel (%p365) target = $region68
      $region67: #{tpu_custom_call.1} parent=5 // pred_region
        %s369 = ssub.s32 %s21, 1
        %p370 = scmp.lt.s32.totalorder %s26, 1
        %s371 = scalar_select %p370, %s26, 1
        %s372 = smul.addr %s371, 8
        %s373 = scalar_lea.vmem %s0, %s372
        %p374 = pneg %p47
        %p375 = pneg %p44
        %p376 = pneg %p68
        %p377 = pneg %p65
        %p378 = pneg %p89
        %p379 = pneg %p86
        %p380 = pneg %p110
        %p381 = pneg %p107
        %p382 = pneg %p131
        %p383 = pneg %p128
        %p384 = pneg %p152
        %p385 = pneg %p149
        %p386 = pneg %p173
        %p387 = pneg %p170
        %p388 = pneg %p194
        %p389 = pneg %p191
        %p390 = pneg %p215
        %p391 = pneg %p212
        %p392 = pneg %p236
        %p393 = pneg %p233
        %p394 = pneg %p257
        %p395 = pneg %p254
        %p396 = pneg %p278
        %p397 = pneg %p275
        %p398 = pneg %p304
        %p399 = pneg %p301
        %s400 = sand.u32 %s291, 1
        %s401 = scalar_lea.sflag [#allocation3], %s400
        %s402 = sand.u32 %s291, 1
        %s403 = smul.addr %s402, 8
        %s404 = scalar_lea.vmem [#allocation2], %s403
        %p405 = scmp.lt.s32.totalorder %s26, 1
        %s406 = scalar_select %p405, %s26, 1
        %s407 = smul.addr %s406, 8
        %s408 = scalar_lea.vmem %s0, %s407
        %v409 = vld [vmem:[%s408] sm:$0xff]
        %v410 = vld [vmem:[%s9] sm:$0xff]
        %v411 = vld [vmem:[%s9 + $0x8] sm:$0xff]
        %v412 = vld [vmem:[%s9 + $0x10] sm:$0xff]
        %v413 = vld [vmem:[%s9 + $0x18] sm:$0xff]
        %v414 = vld [vmem:[%s10] sm:$0xff]
        %v415 = vld [vmem:[%s10 + $0x8] sm:$0xff]
        %v416 = vld [vmem:[%s10 + $0x10] sm:$0xff]
        %v417 = vld [vmem:[%s10 + $0x18] sm:$0xff]
        %v418 = vld [vmem:[%s10 + $0x20] sm:$0xff]
        %v419 = vld [vmem:[%s10 + $0x28] sm:$0xff]
        %v420 = vld [vmem:[%s10 + $0x30] sm:$0xff]
        %v421 = vld [vmem:[%s10 + $0x38] sm:$0xff]
        %v422 = vld [vmem:[%s1] sm:$0xff]
        %v423 = vld [vmem:[%s1 + $0x8] sm:$0xff]
        %v424 = vld [vmem:[%s1 + $0x10] sm:$0xff]
        %v425 = vld [vmem:[%s1 + $0x18] sm:$0xff]
        %v426 = vld [vmem:[%s1 + $0x20] sm:$0xff]
        %v427 = vld [vmem:[%s1 + $0x28] sm:$0xff]
        %v428 = vld [vmem:[%s1 + $0x30] sm:$0xff]
        %v429 = vld [vmem:[%s1 + $0x38] sm:$0xff]
        %v430 = vld [vmem:[%s1 + $0x40] sm:$0xff]
        %v431 = vld [vmem:[%s1 + $0x48] sm:$0xff]
        %v432 = vld [vmem:[%s1 + $0x50] sm:$0xff]
        %v433 = vld [vmem:[%s1 + $0x58] sm:$0xff]
        %v434 = vld [vmem:[%s2] sm:$0x7]
        %v436 = vlaneseq
        %v437 = vshrl.u32 %v436, 7
        %v438 = vsub.s32 0, %v437
        %v439 = vrot.slane %v434, %v438
        %v440 = vlaneseq
        %v441 = vshrl.u32 %v440, 7
        %v442 = vsub.s32 1, %v441
        %v443 = vrot.slane %v434, %v442
        %v444 = vlaneseq
        %v445 = vshrl.u32 %v444, 7
        %v446 = vsub.s32 2, %v445
        %v447 = vrot.slane %v434, %v446
        %vm451 = vcmask 261120
        %v453 = vsel %vm451, %v409, 0
        %455 = vmatprep.subr.mxu0 0.0
        %456 = vmatpush1.msra.mxu0 0.0
        %457 = vmatprep.subr.mxu0 0.0
        %458 = vmatpush1.msra.mxu0 0.0
        %459 = vmatprep.subr.mxu0 0.0
        %460 = vmatpush1.msra.mxu0 0.0
        %461 = vmatprep.subr.mxu0 0.0
        %462 = vmatpush1.msra.mxu0 0.0
        %463 = vmatprep.subr.mxu0 0.0
        %464 = vmatpush1.msra.mxu0 0.0
        %465 = vmatprep.subr.mxu0 0.0
        %466 = vmatpush1.msra.mxu0 0.0
        %467 = vmatprep.subr.mxu0 0.0
        %468 = vmatpush1.msra.mxu0 0.0
        %469 = vmatprep.subr.mxu0 0.0
        %470 = vmatpush1.msra.mxu0 0.0
        %471 = vmatprep.subr.mxu0 0.0
        %472 = vmatpush1.msra.mxu0 0.0
        %473 = vmatprep.subr.mxu0 0.0
        %474 = vmatpush1.msra.mxu0 0.0
        %475 = vmatprep.subr.mxu0 0.0
        %476 = vmatpush1.msra.mxu0 0.0
        %477 = vmatprep.subr.mxu0 0.0
        %478 = vmatpush1.msra.mxu0 0.0
        %479 = vmatprep.subr.mxu0 %v432
        %480 = vmatpush1.msra.mxu0 %v431
        %481 = vmatprep.subr.mxu0 %v429
        %482 = vmatpush1.msra.mxu0 %v428
        %483 = vmatprep.subr.mxu0 %v426
        %484 = vmatpush1.msra.mxu0 %v425
        %485 = vmatprep.subr.mxu0 %v423
        %486 = vmatpush1.msra.mxu0 %v422
        %487 = vmatprep.subr.mxu0 0.0
        %488 = vmatpush2.msra.mxu0 0.0
        %489 = vmatprep.subr.mxu0 0.0
        %490 = vmatpush2.msra.mxu0 0.0
        %491 = vmatprep.subr.mxu0 0.0
        %492 = vmatpush2.msra.mxu0 0.0
        %493 = vmatprep.subr.mxu0 0.0
        %494 = vmatpush2.msra.mxu0 0.0
        %495 = vmatprep.subr.mxu0 0.0
        %496 = vmatpush2.msra.mxu0 0.0
        %497 = vmatprep.subr.mxu0 0.0
        %498 = vmatpush2.msra.mxu0 0.0
        %499 = vmatprep.subr.mxu0 0.0
        %500 = vmatpush2.msra.mxu0 0.0
        %501 = vmatprep.subr.mxu0 0.0
        %502 = vmatpush2.msra.mxu0 0.0
        %503 = vmatprep.subr.mxu0 0.0
        %504 = vmatpush2.msra.mxu0 0.0
        %505 = vmatprep.subr.mxu0 0.0
        %506 = vmatpush2.msra.mxu0 0.0
        %507 = vmatprep.subr.mxu0 0.0
        %508 = vmatpush2.msra.mxu0 0.0
        %509 = vmatprep.subr.mxu0 0.0
        %510 = vmatpush2.msra.mxu0 0.0
        %511 = vmatprep.subr.mxu0 0.0
        %512 = vmatpush2.msra.mxu0 0.0
        %513 = vmatprep.subr.mxu0 0.0
        %514 = vmatpush2.msra.mxu0 0.0
        %515 = vmatprep.subr.mxu0 0.0
        %516 = vmatpush2.msra.mxu0 0.0
        %517 = vmatprep.subr.mxu0 0.0
        %518 = vmatpush2.msra.mxu0 0.0
        %519 = vmatprep.mubr.f32.mxu0 0.0
        %520 = vmatmul.mubr.f32.gmra.mxu0 %v453
        %v521 = vpop.f32.mrf.mxu0
        %v522 = vadd.f32 %v439, %v521
        %v523 = vpop.f32.mrf.mxu0
        %v524 = vadd.f32 %v443, %v523
        %525 = vdwg.mxu0
        %526 = vmatprep.subr.mxu0 0.0
        %527 = vmatpush1.msra.mxu0 0.0
        %528 = vmatprep.subr.mxu0 0.0
        %529 = vmatpush1.msra.mxu0 0.0
        %530 = vmatprep.subr.mxu0 0.0
        %531 = vmatpush1.msra.mxu0 0.0
        %532 = vmatprep.subr.mxu0 0.0
        %533 = vmatpush1.msra.mxu0 0.0
        %534 = vmatprep.subr.mxu0 0.0
        %535 = vmatpush1.msra.mxu0 0.0
        %536 = vmatprep.subr.mxu0 0.0
        %537 = vmatpush1.msra.mxu0 0.0
        %538 = vmatprep.subr.mxu0 0.0
        %539 = vmatpush1.msra.mxu0 0.0
        %540 = vmatprep.subr.mxu0 0.0
        %541 = vmatpush1.msra.mxu0 0.0
        %542 = vmatprep.subr.mxu0 0.0
        %543 = vmatpush1.msra.mxu0 0.0
        %544 = vmatprep.subr.mxu0 0.0
        %545 = vmatpush1.msra.mxu0 0.0
        %546 = vmatprep.subr.mxu0 0.0
        %547 = vmatpush1.msra.mxu0 0.0
        %548 = vmatprep.subr.mxu0 0.0
        %549 = vmatpush1.msra.mxu0 0.0
        %550 = vmatprep.subr.mxu0 0.0
        %551 = vmatpush1.msra.mxu0 %v433
        %552 = vmatprep.subr.mxu0 0.0
        %553 = vmatpush1.msra.mxu0 %v430
        %554 = vmatprep.subr.mxu0 0.0
        %555 = vmatpush1.msra.mxu0 %v427
        %556 = vmatprep.subr.mxu0 0.0
        %557 = vmatpush1.msra.mxu0 %v424
        %558 = vmatprep.subr.mxu0 0.0
        %559 = vmatpush2.msra.mxu0 0.0
        %560 = vmatprep.subr.mxu0 0.0
        %561 = vmatpush2.msra.mxu0 0.0
        %562 = vmatprep.subr.mxu0 0.0
        %563 = vmatpush2.msra.mxu0 0.0
        %564 = vmatprep.subr.mxu0 0.0
        %565 = vmatpush2.msra.mxu0 0.0
        %566 = vmatprep.subr.mxu0 0.0
        %567 = vmatpush2.msra.mxu0 0.0
        %568 = vmatprep.subr.mxu0 0.0
        %569 = vmatpush2.msra.mxu0 0.0
        %570 = vmatprep.subr.mxu0 0.0
        %571 = vmatpush2.msra.mxu0 0.0
        %572 = vmatprep.subr.mxu0 0.0
        %573 = vmatpush2.msra.mxu0 0.0
        %574 = vmatprep.subr.mxu0 0.0
        %575 = vmatpush2.msra.mxu0 0.0
        %576 = vmatprep.subr.mxu0 0.0
        %577 = vmatpush2.msra.mxu0 0.0
        %578 = vmatprep.subr.mxu0 0.0
        %579 = vmatpush2.msra.mxu0 0.0
        %580 = vmatprep.subr.mxu0 0.0
        %581 = vmatpush2.msra.mxu0 0.0
        %582 = vmatprep.subr.mxu0 0.0
        %583 = vmatpush2.msra.mxu0 0.0
        %584 = vmatprep.subr.mxu0 0.0
        %585 = vmatpush2.msra.mxu0 0.0
        %586 = vmatprep.subr.mxu0 0.0
        %587 = vmatpush2.msra.mxu0 0.0
        %588 = vmatprep.subr.mxu0 0.0
        %589 = vmatpush2.msra.mxu0 0.0
        %590 = vmatprep.mubr.f32.mxu0 0.0
        %591 = vmatmul.mubr.f32.gmra.mxu0 %v453
        %v592 = vpop.f32.mrf.mxu0
        %v593 = vadd.f32 %v447, %v592
        %v594 = vpop.f32.mrf.mxu0
        %595 = vdwg.mxu0
        %vm596 = vcmp.gt.f32.partialorder %v522, 0.0
        %vm597 = vcmp.gt.f32.partialorder %v524, 0.0
        %vm598 = vcmp.gt.f32.partialorder %v593, 0.0
        %v599 = vmul.f32 %v522, 0.01
        %v600 = vmul.f32 %v524, 0.01
        %v601 = vmul.f32 %v593, 0.01
        %v602 = vsel %vm596, %v522, %v599
        %v603 = vsel %vm597, %v524, %v600
        %v604 = vsel %vm598, %v593, %v601
        %v605 = vld [vmem:[%s3] sm:$0xff]
        %v606 = vld [vmem:[%s3 + $0x8] sm:$0xff]
        %v607 = vld [vmem:[%s3 + $0x10] sm:$0xff]
        %v608 = vld [vmem:[%s3 + $0x18] sm:$0xff]
        %v609 = vld [vmem:[%s3 + $0x20] sm:$0xff]
        %v610 = vld [vmem:[%s3 + $0x28] sm:$0xff]
        %v611 = vld [vmem:[%s3 + $0x30] sm:$0xff]
        %v612 = vld [vmem:[%s3 + $0x38] sm:$0xff]
        %v613 = vld [vmem:[%s3 + $0x40] sm:$0xff]
        %v614 = vld [vmem:[%s3 + $0x48] sm:$0xff]
        %v615 = vld [vmem:[%s3 + $0x50] sm:$0xff]
        %v616 = vld [vmem:[%s3 + $0x58] sm:$0xff]
        %v617 = vld [vmem:[%s3 + $0x60] sm:$0xff]
        %v618 = vld [vmem:[%s3 + $0x68] sm:$0xff]
        %v619 = vld [vmem:[%s3 + $0x70] sm:$0xff]
        %v620 = vld [vmem:[%s3 + $0x78] sm:$0xff]
        %v621 = vld [vmem:[%s4] sm:$0x1]
        %v623 = vlaneseq
        %v624 = vshrl.u32 %v623, 7
        %v625 = vsub.s32 0, %v624
        %v626 = vrot.slane %v621, %v625
        %628 = vmatprep.subr.mxu0 0.0
        %629 = vmatpush1.msra.mxu0 %v620
        %630 = vmatprep.subr.mxu0 0.0
        %631 = vmatpush1.msra.mxu0 %v619
        %632 = vmatprep.subr.mxu0 0.0
        %633 = vmatpush1.msra.mxu0 %v618
        %634 = vmatprep.subr.mxu0 0.0
        %635 = vmatpush1.msra.mxu0 %v617
        %636 = vmatprep.subr.mxu0 0.0
        %637 = vmatpush1.msra.mxu0 %v616
        %638 = vmatprep.subr.mxu0 0.0
        %639 = vmatpush1.msra.mxu0 %v615
        %640 = vmatprep.subr.mxu0 0.0
        %641 = vmatpush1.msra.mxu0 %v614
        %642 = vmatprep.subr.mxu0 0.0
        %643 = vmatpush1.msra.mxu0 %v613
        %644 = vmatprep.subr.mxu0 0.0
        %645 = vmatpush1.msra.mxu0 %v612
        %646 = vmatprep.subr.mxu0 0.0
        %647 = vmatpush1.msra.mxu0 %v611
        %648 = vmatprep.subr.mxu0 0.0
        %649 = vmatpush1.msra.mxu0 %v610
        %650 = vmatprep.subr.mxu0 0.0
        %651 = vmatpush1.msra.mxu0 %v609
        %652 = vmatprep.subr.mxu0 0.0
        %653 = vmatpush1.msra.mxu0 %v608
        %654 = vmatprep.subr.mxu0 0.0
        %655 = vmatpush1.msra.mxu0 %v607
        %656 = vmatprep.subr.mxu0 0.0
        %657 = vmatpush1.msra.mxu0 %v606
        %658 = vmatprep.subr.mxu0 0.0
        %659 = vmatpush1.msra.mxu0 %v605
        %660 = vmatprep.subr.mxu0 0.0
        %661 = vmatpush2.msra.mxu0 0.0
        %662 = vmatprep.subr.mxu0 0.0
        %663 = vmatpush2.msra.mxu0 0.0
        %664 = vmatprep.subr.mxu0 0.0
        %665 = vmatpush2.msra.mxu0 0.0
        %666 = vmatprep.subr.mxu0 0.0
        %667 = vmatpush2.msra.mxu0 0.0
        %668 = vmatprep.subr.mxu0 0.0
        %669 = vmatpush2.msra.mxu0 0.0
        %670 = vmatprep.subr.mxu0 0.0
        %671 = vmatpush2.msra.mxu0 0.0
        %672 = vmatprep.subr.mxu0 0.0
        %673 = vmatpush2.msra.mxu0 0.0
        %674 = vmatprep.subr.mxu0 0.0
        %675 = vmatpush2.msra.mxu0 0.0
        %676 = vmatprep.subr.mxu0 0.0
        %677 = vmatpush2.msra.mxu0 0.0
        %678 = vmatprep.subr.mxu0 0.0
        %679 = vmatpush2.msra.mxu0 0.0
        %680 = vmatprep.subr.mxu0 0.0
        %681 = vmatpush2.msra.mxu0 0.0
        %682 = vmatprep.subr.mxu0 0.0
        %683 = vmatpush2.msra.mxu0 0.0
        %684 = vmatprep.subr.mxu0 0.0
        %685 = vmatpush2.msra.mxu0 0.0
        %686 = vmatprep.subr.mxu0 0.0
        %687 = vmatpush2.msra.mxu0 0.0
        %688 = vmatprep.subr.mxu0 0.0
        %689 = vmatpush2.msra.mxu0 0.0
        %690 = vmatprep.subr.mxu0 0.0
        %691 = vmatpush2.msra.mxu0 0.0
        %692 = vmatprep.mubr.f32.mxu0 0.0
        %693 = vmatmul.mubr.f32.gmra.mxu0 %v602
        %v694 = vpop.f32.mrf.mxu0
        %v695 = vadd.f32 %v626, %v694
        %v696 = vpop.f32.mrf.mxu0
        %697 = vdwg.mxu0
        %v698 = vld [vmem:[%s5] sm:$0xff]
        %v699 = vld [vmem:[%s5 + $0x8] sm:$0xff]
        %v700 = vld [vmem:[%s5 + $0x10] sm:$0xff]
        %v701 = vld [vmem:[%s5 + $0x18] sm:$0xff]
        %v702 = vld [vmem:[%s5 + $0x20] sm:$0xff]
        %v703 = vld [vmem:[%s5 + $0x28] sm:$0xff]
        %v704 = vld [vmem:[%s5 + $0x30] sm:$0xff]
        %v705 = vld [vmem:[%s5 + $0x38] sm:$0xff]
        %v706 = vld [vmem:[%s5 + $0x40] sm:$0xff]
        %v707 = vld [vmem:[%s5 + $0x48] sm:$0xff]
        %v708 = vld [vmem:[%s5 + $0x50] sm:$0xff]
        %v709 = vld [vmem:[%s5 + $0x58] sm:$0xff]
        %v710 = vld [vmem:[%s5 + $0x60] sm:$0xff]
        %v711 = vld [vmem:[%s5 + $0x68] sm:$0xff]
        %v712 = vld [vmem:[%s5 + $0x70] sm:$0xff]
        %v713 = vld [vmem:[%s5 + $0x78] sm:$0xff]
        %v714 = vld [vmem:[%s6] sm:$0x1]
        %v716 = vlaneseq
        %v717 = vshrl.u32 %v716, 7
        %v718 = vsub.s32 0, %v717
        %v719 = vrot.slane %v714, %v718
        %721 = vmatprep.subr.mxu0 0.0
        %722 = vmatpush1.msra.mxu0 %v713
        %723 = vmatprep.subr.mxu0 0.0
        %724 = vmatpush1.msra.mxu0 %v712
        %725 = vmatprep.subr.mxu0 0.0
        %726 = vmatpush1.msra.mxu0 %v711
        %727 = vmatprep.subr.mxu0 0.0
        %728 = vmatpush1.msra.mxu0 %v710
        %729 = vmatprep.subr.mxu0 0.0
        %730 = vmatpush1.msra.mxu0 %v709
        %731 = vmatprep.subr.mxu0 0.0
        %732 = vmatpush1.msra.mxu0 %v708
        %733 = vmatprep.subr.mxu0 0.0
        %734 = vmatpush1.msra.mxu0 %v707
        %735 = vmatprep.subr.mxu0 0.0
        %736 = vmatpush1.msra.mxu0 %v706
        %737 = vmatprep.subr.mxu0 0.0
        %738 = vmatpush1.msra.mxu0 %v705
        %739 = vmatprep.subr.mxu0 0.0
        %740 = vmatpush1.msra.mxu0 %v704
        %741 = vmatprep.subr.mxu0 0.0
        %742 = vmatpush1.msra.mxu0 %v703
        %743 = vmatprep.subr.mxu0 0.0
        %744 = vmatpush1.msra.mxu0 %v702
        %745 = vmatprep.subr.mxu0 0.0
        %746 = vmatpush1.msra.mxu0 %v701
        %747 = vmatprep.subr.mxu0 0.0
        %748 = vmatpush1.msra.mxu0 %v700
        %749 = vmatprep.subr.mxu0 0.0
        %750 = vmatpush1.msra.mxu0 %v699
        %751 = vmatprep.subr.mxu0 0.0
        %752 = vmatpush1.msra.mxu0 %v698
        %753 = vmatprep.subr.mxu0 0.0
        %754 = vmatpush2.msra.mxu0 0.0
        %755 = vmatprep.subr.mxu0 0.0
        %756 = vmatpush2.msra.mxu0 0.0
        %757 = vmatprep.subr.mxu0 0.0
        %758 = vmatpush2.msra.mxu0 0.0
        %759 = vmatprep.subr.mxu0 0.0
        %760 = vmatpush2.msra.mxu0 0.0
        %761 = vmatprep.subr.mxu0 0.0
        %762 = vmatpush2.msra.mxu0 0.0
        %763 = vmatprep.subr.mxu0 0.0
        %764 = vmatpush2.msra.mxu0 0.0
        %765 = vmatprep.subr.mxu0 0.0
        %766 = vmatpush2.msra.mxu0 0.0
        %767 = vmatprep.subr.mxu0 0.0
        %768 = vmatpush2.msra.mxu0 0.0
        %769 = vmatprep.subr.mxu0 0.0
        %770 = vmatpush2.msra.mxu0 0.0
        %771 = vmatprep.subr.mxu0 0.0
        %772 = vmatpush2.msra.mxu0 0.0
        %773 = vmatprep.subr.mxu0 0.0
        %774 = vmatpush2.msra.mxu0 0.0
        %775 = vmatprep.subr.mxu0 0.0
        %776 = vmatpush2.msra.mxu0 0.0
        %777 = vmatprep.subr.mxu0 0.0
        %778 = vmatpush2.msra.mxu0 0.0
        %779 = vmatprep.subr.mxu0 0.0
        %780 = vmatpush2.msra.mxu0 0.0
        %781 = vmatprep.subr.mxu0 0.0
        %782 = vmatpush2.msra.mxu0 0.0
        %783 = vmatprep.subr.mxu0 0.0
        %784 = vmatpush2.msra.mxu0 0.0
        %785 = vmatprep.mubr.f32.mxu0 0.0
        %786 = vmatmul.mubr.f32.gmra.mxu0 %v603
        %v787 = vpop.f32.mrf.mxu0
        %v788 = vadd.f32 %v719, %v787
        %v789 = vpop.f32.mrf.mxu0
        %790 = vdwg.mxu0
        %v791 = vld [vmem:[%s7] sm:$0xff]
        %v792 = vld [vmem:[%s7 + $0x8] sm:$0xff]
        %v793 = vld [vmem:[%s7 + $0x10] sm:$0xff]
        %v794 = vld [vmem:[%s7 + $0x18] sm:$0xff]
        %v795 = vld [vmem:[%s7 + $0x20] sm:$0xff]
        %v796 = vld [vmem:[%s7 + $0x28] sm:$0xff]
        %v797 = vld [vmem:[%s7 + $0x30] sm:$0xff]
        %v798 = vld [vmem:[%s7 + $0x38] sm:$0xff]
        %v799 = vld [vmem:[%s7 + $0x40] sm:$0xff]
        %v800 = vld [vmem:[%s7 + $0x48] sm:$0xff]
        %v801 = vld [vmem:[%s7 + $0x50] sm:$0xff]
        %v802 = vld [vmem:[%s7 + $0x58] sm:$0xff]
        %v803 = vld [vmem:[%s7 + $0x60] sm:$0xff]
        %v804 = vld [vmem:[%s7 + $0x68] sm:$0xff]
        %v805 = vld [vmem:[%s7 + $0x70] sm:$0xff]
        %v806 = vld [vmem:[%s7 + $0x78] sm:$0xff]
        %v807 = vld [vmem:[%s8] sm:$0x1]
        %v809 = vlaneseq
        %v810 = vshrl.u32 %v809, 7
        %v811 = vsub.s32 0, %v810
        %v812 = vrot.slane %v807, %v811
        %814 = vmatprep.subr.mxu0 0.0
        %815 = vmatpush1.msra.mxu0 %v806
        %816 = vmatprep.subr.mxu0 0.0
        %817 = vmatpush1.msra.mxu0 %v805
        %818 = vmatprep.subr.mxu0 0.0
        %819 = vmatpush1.msra.mxu0 %v804
        %820 = vmatprep.subr.mxu0 0.0
        %821 = vmatpush1.msra.mxu0 %v803
        %822 = vmatprep.subr.mxu0 0.0
        %823 = vmatpush1.msra.mxu0 %v802
        %824 = vmatprep.subr.mxu0 0.0
        %825 = vmatpush1.msra.mxu0 %v801
        %826 = vmatprep.subr.mxu0 0.0
        %827 = vmatpush1.msra.mxu0 %v800
        %828 = vmatprep.subr.mxu0 0.0
        %829 = vmatpush1.msra.mxu0 %v799
        %830 = vmatprep.subr.mxu0 0.0
        %831 = vmatpush1.msra.mxu0 %v798
        %832 = vmatprep.subr.mxu0 0.0
        %833 = vmatpush1.msra.mxu0 %v797
        %834 = vmatprep.subr.mxu0 0.0
        %835 = vmatpush1.msra.mxu0 %v796
        %836 = vmatprep.subr.mxu0 0.0
        %837 = vmatpush1.msra.mxu0 %v795
        %838 = vmatprep.subr.mxu0 0.0
        %839 = vmatpush1.msra.mxu0 %v794
        %840 = vmatprep.subr.mxu0 0.0
        %841 = vmatpush1.msra.mxu0 %v793
        %842 = vmatprep.subr.mxu0 0.0
        %843 = vmatpush1.msra.mxu0 %v792
        %844 = vmatprep.subr.mxu0 0.0
        %845 = vmatpush1.msra.mxu0 %v791
        %846 = vmatprep.subr.mxu0 0.0
        %847 = vmatpush2.msra.mxu0 0.0
        %848 = vmatprep.subr.mxu0 0.0
        %849 = vmatpush2.msra.mxu0 0.0
        %850 = vmatprep.subr.mxu0 0.0
        %851 = vmatpush2.msra.mxu0 0.0
        %852 = vmatprep.subr.mxu0 0.0
        %853 = vmatpush2.msra.mxu0 0.0
        %854 = vmatprep.subr.mxu0 0.0
        %855 = vmatpush2.msra.mxu0 0.0
        %856 = vmatprep.subr.mxu0 0.0
        %857 = vmatpush2.msra.mxu0 0.0
        %858 = vmatprep.subr.mxu0 0.0
        %859 = vmatpush2.msra.mxu0 0.0
        %860 = vmatprep.subr.mxu0 0.0
        %861 = vmatpush2.msra.mxu0 0.0
        %862 = vmatprep.subr.mxu0 0.0
        %863 = vmatpush2.msra.mxu0 0.0
        %864 = vmatprep.subr.mxu0 0.0
        %865 = vmatpush2.msra.mxu0 0.0
        %866 = vmatprep.subr.mxu0 0.0
        %867 = vmatpush2.msra.mxu0 0.0
        %868 = vmatprep.subr.mxu0 0.0
        %869 = vmatpush2.msra.mxu0 0.0
        %870 = vmatprep.subr.mxu0 0.0
        %871 = vmatpush2.msra.mxu0 0.0
        %872 = vmatprep.subr.mxu0 0.0
        %873 = vmatpush2.msra.mxu0 0.0
        %874 = vmatprep.subr.mxu0 0.0
        %875 = vmatpush2.msra.mxu0 0.0
        %876 = vmatprep.subr.mxu0 0.0
        %877 = vmatpush2.msra.mxu0 0.0
        %878 = vmatprep.mubr.f32.mxu0 0.0
        %879 = vmatmul.mubr.f32.gmra.mxu0 %v604
        %v880 = vpop.f32.mrf.mxu0
        %v881 = vadd.f32 %v812, %v880
        %v882 = vpop.f32.mrf.mxu0
        %883 = vdwg.mxu0
        %v885 = vsel %vm451, %v695, 0
        %v888 = vsel %vm451, %v788, 0
        %v891 = vsel %vm451, %v881, 0
        %893 = vmatprep.subr.mxu0 0.0
        %894 = vmatpush1.msra.mxu0 0.0
        %895 = vmatprep.subr.mxu0 0.0
        %896 = vmatpush1.msra.mxu0 0.0
        %897 = vmatprep.subr.mxu0 0.0
        %898 = vmatpush1.msra.mxu0 0.0
        %899 = vmatprep.subr.mxu0 0.0
        %900 = vmatpush1.msra.mxu0 0.0
        %901 = vmatprep.subr.mxu0 0.0
        %902 = vmatpush1.msra.mxu0 0.0
        %903 = vmatprep.subr.mxu0 0.0
        %904 = vmatpush1.msra.mxu0 0.0
        %905 = vmatprep.subr.mxu0 0.0
        %906 = vmatpush1.msra.mxu0 0.0
        %907 = vmatprep.subr.mxu0 0.0
        %908 = vmatpush1.msra.mxu0 0.0
        %909 = vmatprep.subr.mxu0 0.0
        %910 = vmatpush1.msra.mxu0 0.0
        %911 = vmatprep.subr.mxu0 0.0
        %912 = vmatpush1.msra.mxu0 0.0
        %913 = vmatprep.subr.mxu0 0.0
        %914 = vmatpush1.msra.mxu0 0.0
        %915 = vmatprep.subr.mxu0 0.0
        %916 = vmatpush1.msra.mxu0 0.0
        %917 = vmatprep.subr.mxu0 0.0
        %918 = vmatpush1.msra.mxu0 %v413
        %919 = vmatprep.subr.mxu0 0.0
        %920 = vmatpush1.msra.mxu0 %v412
        %921 = vmatprep.subr.mxu0 0.0
        %922 = vmatpush1.msra.mxu0 %v411
        %923 = vmatprep.subr.mxu0 0.0
        %924 = vmatpush1.msra.mxu0 %v410
        %925 = vmatprep.subr.mxu0 0.0
        %926 = vmatpush2.msra.mxu0 0.0
        %927 = vmatprep.subr.mxu0 0.0
        %928 = vmatpush2.msra.mxu0 0.0
        %929 = vmatprep.subr.mxu0 0.0
        %930 = vmatpush2.msra.mxu0 0.0
        %931 = vmatprep.subr.mxu0 0.0
        %932 = vmatpush2.msra.mxu0 0.0
        %933 = vmatprep.subr.mxu0 0.0
        %934 = vmatpush2.msra.mxu0 0.0
        %935 = vmatprep.subr.mxu0 0.0
        %936 = vmatpush2.msra.mxu0 0.0
        %937 = vmatprep.subr.mxu0 0.0
        %938 = vmatpush2.msra.mxu0 0.0
        %939 = vmatprep.subr.mxu0 0.0
        %940 = vmatpush2.msra.mxu0 0.0
        %941 = vmatprep.subr.mxu0 0.0
        %942 = vmatpush2.msra.mxu0 0.0
        %943 = vmatprep.subr.mxu0 0.0
        %944 = vmatpush2.msra.mxu0 0.0
        %945 = vmatprep.subr.mxu0 0.0
        %946 = vmatpush2.msra.mxu0 0.0
        %947 = vmatprep.subr.mxu0 0.0
        %948 = vmatpush2.msra.mxu0 0.0
        %949 = vmatprep.subr.mxu0 0.0
        %950 = vmatpush2.msra.mxu0 0.0
        %951 = vmatprep.subr.mxu0 0.0
        %952 = vmatpush2.msra.mxu0 0.0
        %953 = vmatprep.subr.mxu0 0.0
        %954 = vmatpush2.msra.mxu0 0.0
        %955 = vmatprep.subr.mxu0 0.0
        %956 = vmatpush2.msra.mxu0 0.0
        %957 = vmatprep.mubr.f32.mxu0 0.0
        %958 = vmatmul.mubr.f32.gmra.mxu0 %v885
        %v959 = vpop.f32.mrf.mxu0
        %v960 = vadd.f32 0.0, %v959
        %v961 = vpop.f32.mrf.mxu0
        %962 = vmatprep.mubr.f32.mxu0 0.0
        %963 = vmatmul.mubr.f32.gmra.mxu0 %v888
        %v964 = vpop.f32.mrf.mxu0
        %v965 = vadd.f32 0.0, %v964
        %v966 = vpop.f32.mrf.mxu0
        %967 = vmatprep.mubr.f32.mxu0 0.0
        %968 = vmatmul.mubr.f32.gmra.mxu0 %v891
        %v969 = vpop.f32.mrf.mxu0
        %v970 = vadd.f32 0.0, %v969
        %v971 = vpop.f32.mrf.mxu0
        %972 = vdwg.mxu0
        %v973 = vmul.f32 %v960, %v960
        %v974 = vmul.f32 %v965, %v965
        %v975 = vmul.f32 %v970, %v970
        %979 = vrot.lane.b32.xlu0 %v973, 96
        %v980 = vpop.permute.xlu0 %979
        %981 = vrot.lane.b32.xlu0 %v974, 96
        %v982 = vpop.permute.xlu0 %981
        %983 = vrot.lane.b32.xlu0 %v975, 96
        %v984 = vpop.permute.xlu0 %983
        %v988 = vadd.f32 %v973, %v980
        %v989 = vadd.f32 %v974, %v982
        %v990 = vadd.f32 %v975, %v984
        %v991 = vrsqrt.pop %v988
        %v992 = vmul.f32 %v988, %v991
        %vm993 = vcmp.eq.f32.partialorder %v988, inf
        %v994 = vsel %vm993, %v988, %v992
        %vm995 = vcmp.eq.f32.partialorder %v988, 0.0
        %v996 = vand.u32 %v988, 2147483648
        %v997 = vsel %vm995, %v996, %v994
        %v998 = vrsqrt.pop %v989
        %v999 = vmul.f32 %v989, %v998
        %vm1000 = vcmp.eq.f32.partialorder %v989, inf
        %v1001 = vsel %vm1000, %v989, %v999
        %vm1002 = vcmp.eq.f32.partialorder %v989, 0.0
        %v1003 = vand.u32 %v989, 2147483648
        %v1004 = vsel %vm1002, %v1003, %v1001
        %v1005 = vrsqrt.pop %v990
        %v1006 = vmul.f32 %v990, %v1005
        %vm1007 = vcmp.eq.f32.partialorder %v990, inf
        %v1008 = vsel %vm1007, %v990, %v1006
        %vm1009 = vcmp.eq.f32.partialorder %v990, 0.0
        %v1010 = vand.u32 %v990, 2147483648
        %v1011 = vsel %vm1009, %v1010, %v1008
        %v1012 = vadd.f32 %v997, 1e-05
        %v1013 = vadd.f32 %v1004, 1e-05
        %v1014 = vadd.f32 %v1011, 1e-05
        %v1015 = vrcp.pop %v1012
        %v1016 = vrcp.pop %v1013
        %v1017 = vrcp.pop %v1014
        %v1018 = vmul.f32 %v1012, %v1015
        %v1019 = vmul.f32 %v1013, %v1016
        %v1020 = vmul.f32 %v1014, %v1017
        %v1021 = vsub.f32 2.0, %v1018
        %v1022 = vsub.f32 2.0, %v1019
        %v1023 = vsub.f32 2.0, %v1020
        %v1024 = vmul.f32 %v1015, %v1021
        %v1025 = vmul.f32 %v1016, %v1022
        %v1026 = vmul.f32 %v1017, %v1023
        %v1027 = vmul.f32 %v960, %v1024
        %v1028 = vmul.f32 %v965, %v1025
        %v1029 = vmul.f32 %v970, %v1026
        %1033 = vrot.lane.b32.xlu0 %v1024, 32
        %v1034 = vpop.permute.xlu0 %1033
        %1035 = vrot.lane.b32.xlu0 %v1025, 32
        %v1036 = vpop.permute.xlu0 %1035
        %1037 = vrot.lane.b32.xlu0 %v1026, 32
        %v1038 = vpop.permute.xlu0 %1037
        %v1042 = vmul.f32 %v960, %v1034
        %v1043 = vmul.f32 %v965, %v1036
        %v1044 = vmul.f32 %v970, %v1038
        %v1045 = vmul.f32 %v1028, %v1029
        %v1046 = vmul.f32 %v1043, %v1044
        %1048 = vrot.lane.b32.xlu0 %v1046, 96
        %v1049 = vpop.permute.xlu0 %1048
        %v1051 = vsub.f32 %v1045, %v1049
        %1053 = vrot.lane.b32.xlu0 %v1044, 96
        %v1054 = vpop.permute.xlu0 %1053
        %v1056 = vmul.f32 %v1028, %v1054
        %1058 = vrot.lane.b32.xlu0 %v1029, 32
        %v1059 = vpop.permute.xlu0 %1058
        %v1061 = vmul.f32 %v1043, %v1059
        %1063 = vrot.lane.b32.xlu0 %v1061, 96
        %v1064 = vpop.permute.xlu0 %1063
        %v1066 = vadd.f32 %v1056, %v1064
        %1068 = vrot.lane.b32.xlu0 %v1066, 32
        %v1069 = vpop.permute.xlu0 %1068
        %v1071 = vsel %vm451, %v1051, %v1069
        %vm1072 = vcmask 523264
        %v1074 = vsel %vm1072, %v1071, 0
        %1076 = vmatprep.subr.mxu0 0.0
        %1077 = vmatpush1.msra.mxu0 0.0
        %1078 = vmatprep.subr.mxu0 0.0
        %1079 = vmatpush1.msra.mxu0 0.0
        %1080 = vmatprep.subr.mxu0 0.0
        %1081 = vmatpush1.msra.mxu0 0.0
        %1082 = vmatprep.subr.mxu0 0.0
        %1083 = vmatpush1.msra.mxu0 0.0
        %1084 = vmatprep.subr.mxu0 0.0
        %1085 = vmatpush1.msra.mxu0 0.0
        %1086 = vmatprep.subr.mxu0 0.0
        %1087 = vmatpush1.msra.mxu0 0.0
        %1088 = vmatprep.subr.mxu0 0.0
        %1089 = vmatpush1.msra.mxu0 0.0
        %1090 = vmatprep.subr.mxu0 0.0
        %1091 = vmatpush1.msra.mxu0 0.0
        %1092 = vmatprep.subr.mxu0 0.0
        %1093 = vmatpush1.msra.mxu0 %v421
        %1094 = vmatprep.subr.mxu0 0.0
        %1095 = vmatpush1.msra.mxu0 %v420
        %1096 = vmatprep.subr.mxu0 0.0
        %1097 = vmatpush1.msra.mxu0 %v419
        %1098 = vmatprep.subr.mxu0 0.0
        %1099 = vmatpush1.msra.mxu0 %v418
        %1100 = vmatprep.subr.mxu0 0.0
        %1101 = vmatpush1.msra.mxu0 %v417
        %1102 = vmatprep.subr.mxu0 0.0
        %1103 = vmatpush1.msra.mxu0 %v416
        %1104 = vmatprep.subr.mxu0 0.0
        %1105 = vmatpush1.msra.mxu0 %v415
        %1106 = vmatprep.subr.mxu0 0.0
        %1107 = vmatpush1.msra.mxu0 %v414
        %1108 = vmatprep.subr.mxu0 0.0
        %1109 = vmatpush2.msra.mxu0 0.0
        %1110 = vmatprep.subr.mxu0 0.0
        %1111 = vmatpush2.msra.mxu0 0.0
        %1112 = vmatprep.subr.mxu0 0.0
        %1113 = vmatpush2.msra.mxu0 0.0
        %1114 = vmatprep.subr.mxu0 0.0
        %1115 = vmatpush2.msra.mxu0 0.0
        %1116 = vmatprep.subr.mxu0 0.0
        %1117 = vmatpush2.msra.mxu0 0.0
        %1118 = vmatprep.subr.mxu0 0.0
        %1119 = vmatpush2.msra.mxu0 0.0
        %1120 = vmatprep.subr.mxu0 0.0
        %1121 = vmatpush2.msra.mxu0 0.0
        %1122 = vmatprep.subr.mxu0 0.0
        %1123 = vmatpush2.msra.mxu0 0.0
        %1124 = vmatprep.subr.mxu0 0.0
        %1125 = vmatpush2.msra.mxu0 0.0
        %1126 = vmatprep.subr.mxu0 0.0
        %1127 = vmatpush2.msra.mxu0 0.0
        %1128 = vmatprep.subr.mxu0 0.0
        %1129 = vmatpush2.msra.mxu0 0.0
        %1130 = vmatprep.subr.mxu0 0.0
        %1131 = vmatpush2.msra.mxu0 0.0
        %1132 = vmatprep.subr.mxu0 0.0
        %1133 = vmatpush2.msra.mxu0 0.0
        %1134 = vmatprep.subr.mxu0 0.0
        %1135 = vmatpush2.msra.mxu0 0.0
        %1136 = vmatprep.subr.mxu0 0.0
        %1137 = vmatpush2.msra.mxu0 0.0
        %1138 = vmatprep.subr.mxu0 0.0
        %1139 = vmatpush2.msra.mxu0 0.0
        %1140 = vmatprep.mubr.f32.mxu0 0.0
        %1141 = vmatmul.mubr.f32.gmra.mxu0 %v1074
        %v1142 = vpop.f32.mrf.mxu0
        %v1143 = vadd.f32 0.0, %v1142
        %v1144 = vpop.f32.mrf.mxu0
        %1145 = vdwg.mxu0
        %v1146 = vld [vmem:[%s11] sm:$0xff]
        %vm1147 = vcmask 64512
        %v1149 = vsel %vm1147, %v1146, 0
        %1151 = vmatprep.subr.mxu0 0.0
        %1152 = vmatpush1.msra.mxu0 0.0
        %1153 = vmatprep.subr.mxu0 0.0
        %1154 = vmatpush1.msra.mxu0 0.0
        %1155 = vmatprep.subr.mxu0 0.0
        %1156 = vmatpush1.msra.mxu0 0.0
        %1157 = vmatprep.subr.mxu0 0.0
        %1158 = vmatpush1.msra.mxu0 0.0
        %1159 = vmatprep.subr.mxu0 0.0
        %1160 = vmatpush1.msra.mxu0 0.0
        %1161 = vmatprep.subr.mxu0 0.0
        %1162 = vmatpush1.msra.mxu0 0.0
        %1163 = vmatprep.subr.mxu0 0.0
        %1164 = vmatpush1.msra.mxu0 0.0
        %1165 = vmatprep.subr.mxu0 0.0
        %1166 = vmatpush1.msra.mxu0 0.0
        %1167 = vmatprep.subr.mxu0 0.0
        %1168 = vmatpush1.msra.mxu0 0.0
        %1169 = vmatprep.subr.mxu0 0.0
        %1170 = vmatpush1.msra.mxu0 0.0
        %1171 = vmatprep.subr.mxu0 0.0
        %1172 = vmatpush1.msra.mxu0 0.0
        %1173 = vmatprep.subr.mxu0 0.0
        %1174 = vmatpush1.msra.mxu0 0.0
        %1175 = vmatprep.subr.mxu0 0.0
        %1176 = vmatpush1.msra.mxu0 0.0
        %1177 = vmatprep.subr.mxu0 0.0
        %1178 = vmatpush1.msra.mxu0 0.0
        %1179 = vmatprep.subr.mxu0 0.0
        %1180 = vmatpush1.msra.mxu0 0.0
        %1181 = vmatprep.subr.mxu0 0.0
        %1182 = vmatpush1.msra.mxu0 %v1143
        %1183 = vmatprep.subr.mxu0 0.0
        %1184 = vmatpush2.msra.mxu0 0.0
        %1185 = vmatprep.subr.mxu0 0.0
        %1186 = vmatpush2.msra.mxu0 0.0
        %1187 = vmatprep.subr.mxu0 0.0
        %1188 = vmatpush2.msra.mxu0 0.0
        %1189 = vmatprep.subr.mxu0 0.0
        %1190 = vmatpush2.msra.mxu0 0.0
        %1191 = vmatprep.subr.mxu0 0.0
        %1192 = vmatpush2.msra.mxu0 0.0
        %1193 = vmatprep.subr.mxu0 0.0
        %1194 = vmatpush2.msra.mxu0 0.0
        %1195 = vmatprep.subr.mxu0 0.0
        %1196 = vmatpush2.msra.mxu0 0.0
        %1197 = vmatprep.subr.mxu0 0.0
        %1198 = vmatpush2.msra.mxu0 0.0
        %1199 = vmatprep.subr.mxu0 0.0
        %1200 = vmatpush2.msra.mxu0 0.0
        %1201 = vmatprep.subr.mxu0 0.0
        %1202 = vmatpush2.msra.mxu0 0.0
        %1203 = vmatprep.subr.mxu0 0.0
        %1204 = vmatpush2.msra.mxu0 0.0
        %1205 = vmatprep.subr.mxu0 0.0
        %1206 = vmatpush2.msra.mxu0 0.0
        %1207 = vmatprep.subr.mxu0 0.0
        %1208 = vmatpush2.msra.mxu0 0.0
        %1209 = vmatprep.subr.mxu0 0.0
        %1210 = vmatpush2.msra.mxu0 0.0
        %1211 = vmatprep.subr.mxu0 0.0
        %1212 = vmatpush2.msra.mxu0 0.0
        %1213 = vmatprep.subr.mxu0 0.0
        %1214 = vmatpush2.msra.mxu0 0.0
        %1215 = vmatprep.mubr.f32.mxu0 0.0
        %1216 = vmatmul.mubr.f32.gmra.mxu0 %v1149
        %v1217 = vpop.f32.mrf.mxu0
        %v1218 = vadd.f32 0.0, %v1217
        %v1219 = vpop.f32.mrf.mxu0
        %1220 = vdwg.mxu0
        %v1222 = vsel %vm451, %v1218, 0
        %1224 = vmatprep.subr.mxu0 0.0
        %1225 = vmatpush1.msra.mxu0 0.0
        %1226 = vmatprep.subr.mxu0 0.0
        %1227 = vmatpush1.msra.mxu0 0.0
        %1228 = vmatprep.subr.mxu0 0.0
        %1229 = vmatpush1.msra.mxu0 0.0
        %1230 = vmatprep.subr.mxu0 0.0
        %1231 = vmatpush1.msra.mxu0 0.0
        %1232 = vmatprep.subr.mxu0 0.0
        %1233 = vmatpush1.msra.mxu0 0.0
        %1234 = vmatprep.subr.mxu0 0.0
        %1235 = vmatpush1.msra.mxu0 0.0
        %1236 = vmatprep.subr.mxu0 0.0
        %1237 = vmatpush1.msra.mxu0 0.0
        %1238 = vmatprep.subr.mxu0 0.0
        %1239 = vmatpush1.msra.mxu0 0.0
        %1240 = vmatprep.subr.mxu0 0.0
        %1241 = vmatpush1.msra.mxu0 0.0
        %1242 = vmatprep.subr.mxu0 0.0
        %1243 = vmatpush1.msra.mxu0 0.0
        %1244 = vmatprep.subr.mxu0 0.0
        %1245 = vmatpush1.msra.mxu0 0.0
        %1246 = vmatprep.subr.mxu0 0.0
        %1247 = vmatpush1.msra.mxu0 0.0
        %1248 = vmatprep.subr.mxu0 0.0
        %1249 = vmatpush1.msra.mxu0 %v413
        %1250 = vmatprep.subr.mxu0 0.0
        %1251 = vmatpush1.msra.mxu0 %v412
        %1252 = vmatprep.subr.mxu0 0.0
        %1253 = vmatpush1.msra.mxu0 %v411
        %1254 = vmatprep.subr.mxu0 0.0
        %1255 = vmatpush1.msra.mxu0 %v410
        %1256 = vmatprep.subr.mxu0 0.0
        %1257 = vmatpush2.msra.mxu0 0.0
        %1258 = vmatprep.subr.mxu0 0.0
        %1259 = vmatpush2.msra.mxu0 0.0
        %1260 = vmatprep.subr.mxu0 0.0
        %1261 = vmatpush2.msra.mxu0 0.0
        %1262 = vmatprep.subr.mxu0 0.0
        %1263 = vmatpush2.msra.mxu0 0.0
        %1264 = vmatprep.subr.mxu0 0.0
        %1265 = vmatpush2.msra.mxu0 0.0
        %1266 = vmatprep.subr.mxu0 0.0
        %1267 = vmatpush2.msra.mxu0 0.0
        %1268 = vmatprep.subr.mxu0 0.0
        %1269 = vmatpush2.msra.mxu0 0.0
        %1270 = vmatprep.subr.mxu0 0.0
        %1271 = vmatpush2.msra.mxu0 0.0
        %1272 = vmatprep.subr.mxu0 0.0
        %1273 = vmatpush2.msra.mxu0 0.0
        %1274 = vmatprep.subr.mxu0 0.0
        %1275 = vmatpush2.msra.mxu0 0.0
        %1276 = vmatprep.subr.mxu0 0.0
        %1277 = vmatpush2.msra.mxu0 0.0
        %1278 = vmatprep.subr.mxu0 0.0
        %1279 = vmatpush2.msra.mxu0 0.0
        %1280 = vmatprep.subr.mxu0 0.0
        %1281 = vmatpush2.msra.mxu0 0.0
        %1282 = vmatprep.subr.mxu0 0.0
        %1283 = vmatpush2.msra.mxu0 0.0
        %1284 = vmatprep.subr.mxu0 0.0
        %1285 = vmatpush2.msra.mxu0 0.0
        %1286 = vmatprep.subr.mxu0 0.0
        %1287 = vmatpush2.msra.mxu0 0.0
        %1288 = vmatprep.mubr.f32.mxu0 0.0
        %1289 = vmatmul.mubr.f32.gmra.mxu0 %v1222
        %v1290 = vpop.f32.mrf.mxu0
        %v1291 = vadd.f32 0.0, %v1290
        %v1292 = vpop.f32.mrf.mxu0
        %1293 = vdwg.mxu0
        %v1294 = vmul.f32 %v1291, %v1027
        %v1295 = vmul.f32 %v1291, %v1042
        %1297 = vrot.lane.b32.xlu0 %v1295, 96
        %v1298 = vpop.permute.xlu0 %1297
        %v1300 = vadd.f32 %v1294, %v1298
        %1302 = vrot.lane.b32.xlu0 %v1027, 32
        %v1303 = vpop.permute.xlu0 %1302
        %v1305 = vmul.f32 %v1291, %v1303
        %1307 = vrot.lane.b32.xlu0 %v1042, 96
        %v1308 = vpop.permute.xlu0 %1307
        %v1310 = vmul.f32 %v1291, %v1308
        %1312 = vrot.lane.b32.xlu0 %v1310, 32
        %v1313 = vpop.permute.xlu0 %1312
        %v1315 = vsub.f32 %v1305, %v1313
        %v1316 = vsel %vm451, %v1300, %v1315
        %v1318 = vsel %vm1072, %v1316, 0
        %1320 = vmatprep.subr.mxu0 0.0
        %1321 = vmatpush1.msra.mxu0 0.0
        %1322 = vmatprep.subr.mxu0 0.0
        %1323 = vmatpush1.msra.mxu0 0.0
        %1324 = vmatprep.subr.mxu0 0.0
        %1325 = vmatpush1.msra.mxu0 0.0
        %1326 = vmatprep.subr.mxu0 0.0
        %1327 = vmatpush1.msra.mxu0 0.0
        %1328 = vmatprep.subr.mxu0 0.0
        %1329 = vmatpush1.msra.mxu0 0.0
        %1330 = vmatprep.subr.mxu0 0.0
        %1331 = vmatpush1.msra.mxu0 0.0
        %1332 = vmatprep.subr.mxu0 0.0
        %1333 = vmatpush1.msra.mxu0 0.0
        %1334 = vmatprep.subr.mxu0 0.0
        %1335 = vmatpush1.msra.mxu0 0.0
        %1336 = vmatprep.subr.mxu0 0.0
        %1337 = vmatpush1.msra.mxu0 %v421
        %1338 = vmatprep.subr.mxu0 0.0
        %1339 = vmatpush1.msra.mxu0 %v420
        %1340 = vmatprep.subr.mxu0 0.0
        %1341 = vmatpush1.msra.mxu0 %v419
        %1342 = vmatprep.subr.mxu0 0.0
        %1343 = vmatpush1.msra.mxu0 %v418
        %1344 = vmatprep.subr.mxu0 0.0
        %1345 = vmatpush1.msra.mxu0 %v417
        %1346 = vmatprep.subr.mxu0 0.0
        %1347 = vmatpush1.msra.mxu0 %v416
        %1348 = vmatprep.subr.mxu0 0.0
        %1349 = vmatpush1.msra.mxu0 %v415
        %1350 = vmatprep.subr.mxu0 0.0
        %1351 = vmatpush1.msra.mxu0 %v414
        %1352 = vmatprep.subr.mxu0 0.0
        %1353 = vmatpush2.msra.mxu0 0.0
        %1354 = vmatprep.subr.mxu0 0.0
        %1355 = vmatpush2.msra.mxu0 0.0
        %1356 = vmatprep.subr.mxu0 0.0
        %1357 = vmatpush2.msra.mxu0 0.0
        %1358 = vmatprep.subr.mxu0 0.0
        %1359 = vmatpush2.msra.mxu0 0.0
        %1360 = vmatprep.subr.mxu0 0.0
        %1361 = vmatpush2.msra.mxu0 0.0
        %1362 = vmatprep.subr.mxu0 0.0
        %1363 = vmatpush2.msra.mxu0 0.0
        %1364 = vmatprep.subr.mxu0 0.0
        %1365 = vmatpush2.msra.mxu0 0.0
        %1366 = vmatprep.subr.mxu0 0.0
        %1367 = vmatpush2.msra.mxu0 0.0
        %1368 = vmatprep.subr.mxu0 0.0
        %1369 = vmatpush2.msra.mxu0 0.0
        %1370 = vmatprep.subr.mxu0 0.0
        %1371 = vmatpush2.msra.mxu0 0.0
        %1372 = vmatprep.subr.mxu0 0.0
        %1373 = vmatpush2.msra.mxu0 0.0
        %1374 = vmatprep.subr.mxu0 0.0
        %1375 = vmatpush2.msra.mxu0 0.0
        %1376 = vmatprep.subr.mxu0 0.0
        %1377 = vmatpush2.msra.mxu0 0.0
        %1378 = vmatprep.subr.mxu0 0.0
        %1379 = vmatpush2.msra.mxu0 0.0
        %1380 = vmatprep.subr.mxu0 0.0
        %1381 = vmatpush2.msra.mxu0 0.0
        %1382 = vmatprep.subr.mxu0 0.0
        %1383 = vmatpush2.msra.mxu0 0.0
        %1384 = vmatprep.mubr.f32.mxu0 0.0
        %1385 = vmatmul.mubr.f32.gmra.mxu0 %v1318
        %v1386 = vpop.f32.mrf.mxu0
        %v1387 = vadd.f32 0.0, %v1386
        %v1388 = vpop.f32.mrf.mxu0
        %1389 = vdwg.mxu0
        %1390 = vst.msk [vmem:[%s404] sm:$0xff] %vm451, %v1387
        %s1391 = sand.u32 %s291, 1
        %s1392 = scalar_lea.sflag [#allocation3], %s1391
        %s1393 = sand.u32 %s291, 1
        %s1394 = smul.addr %s1393, 8
        %s1395 = scalar_lea.vmem [#allocation2], %s1394
        // Predicated region
        $region69: #{tpu_custom_call.1} parent=67 // pred_check
          %p1396 = pneg %p301
        $region70: #{tpu_custom_call.1} parent=67 // pred_check_branch
          %1398 = sbr.rel (%p1396) target = $region72
        $region71: #{tpu_custom_call.1} parent=67 // pred_region
          %s1400 = ssub.s32 128, 128
          %1401 = vsyncadd %s1392, %s1400
          %s1402 = smul.addr %s26, 128
          %s1403 = scalar_lea.hbm %s12, %s1402
          %s1405 = sshll.u32 %s1395, 4
          %s1406 = int_to_ptr.vmem [resolvable:$true] %s1405
          %1408 = dma.vmem_to_hbm [thread:$0]  %s1406, 128, %s1403, %s1392
        $region72: #{tpu_custom_call.1} parent=67 // pred_fallthru
          _
      $region68: #{tpu_custom_call.1} parent=5 // pred_fallthru
        _
      %p1409 = scmp.le.s32.totalorder 2, %s21
      // Predicated region
      $region73: #{tpu_custom_call.1} parent=5 // pred_check
        %p1410 = pneg %p1409
      $region74: #{tpu_custom_call.1} parent=5 // pred_check_branch
        %1412 = sbr.rel (%p1410) target = $region76
      $region75: #{tpu_custom_call.1} parent=5 // pred_region
        %s1413 = ssub.s32 %s21, 2
        // Predicated region
        $region77: #{tpu_custom_call.1} parent=75 // pred_check
          %p1414 = pneg %p307
        $region78: #{tpu_custom_call.1} parent=75 // pred_check_branch
          %1416 = sbr.rel (%p1414) target = $region80
        $region79: #{tpu_custom_call.1} parent=75 // pred_region
          %s1417 = sand.u32 %s292, 1
          %s1418 = scalar_lea.sflag [#allocation3], %s1417
          %s1419 = sand.u32 %s292, 1
          %s1420 = smul.addr %s1419, 8
          %s1421 = scalar_lea.vmem [#allocation2], %s1420
          %1422 = dma.done %s1418, 128
        $region80: #{tpu_custom_call.1} parent=75 // pred_fallthru
          _
      $region76: #{tpu_custom_call.1} parent=5 // pred_fallthru
        _
    $region6: #{tpu_custom_call.1} parent=1 // loop_footer
      %s25 = sadd.s32 1, %s21
    $region7: #{tpu_custom_call.1} parent=1 // loop_footer_branch
      %20 = sbr.rel target = $region3
    $region8: #{tpu_custom_call.1} parent=1 // loop_exit
      _
    %1423 = vsyncpa [#allocation3], 1
    %s1424 = scalar_lea.sflag [#allocation3], 1
    %1425 = vsyncpa %s1424, 1

</llo_original>
